<compile_context>
chip_gen: v5e
topology: v5e:2x2
jax: 0.10.0
libtpu: 0.0.40
codegen_flags: <defaults>
</compile_context>

<pallas_src>
import functools
import math

import jax
import jax.numpy as jnp
from jax.experimental import pallas as pl
from jax.experimental.pallas import tpu as pltpu


# ---------------------------------------------------------------------------
# Fused kernel: relu(pre_fc(x)) -> wavefronted n-layer LSTM -> fc(top h_T)
# ---------------------------------------------------------------------------
def _fused_kernel(x_ref, h0_ref, c0_ref, w_pre_ref, b_pre_ref,
                  w_fc_ref, b_fc_ref, wx_ref, b_pack_ref, w_pack_ref,
                  out_ref, hN_ref, cN_ref, *, L, T, B, H, SLOT):
    f32 = jnp.float32
    bf16 = jnp.bfloat16
    LH = L * H

    # ---- pre_fc + ReLU for all (t, b) rows at once (x rows are time-major) ----
    pre = jnp.dot(x_ref[...].astype(bf16), w_pre_ref[...],
                  preferred_element_type=f32) + b_pre_ref[...]
    pre = jnp.maximum(pre, 0.0)                                  # (T*B, 16) f32

    # ---- hoisted layer-0 input projection into gate-aligned columns + biases.
    # Columns for layers >= 1 are zero in wx, so gx there is just the bias —
    # no inter-layer barrier is introduced (layer-0's x is an external input).
    gx = jnp.dot(pre.astype(bf16), wx_ref[...],
                 preferred_element_type=f32) + b_pack_ref[...]   # (T*B, 4*SLOT)

    # ---- packed recurrent state: lanes [l*H:(l+1)*H] hold layer l's h / c ----
    h_pack = jnp.concatenate([h0_ref[l] for l in range(L)], axis=-1)  # (B, LH)
    c_pack = jnp.concatenate([c0_ref[l] for l in range(L)], axis=-1)  # (B, LH)

    lane = jax.lax.broadcasted_iota(jnp.int32, (B, LH), 1)       # static mask src
    wp = w_pack_ref[...]                                         # (LH, 4*SLOT) bf16

    # ---- wavefront: step s -> layer l processes timestep t = s - l ----
    for s in range(T + L - 1):
        t0 = min(s, T - 1)           # layer-0 timestep (value ignored once layer 0 is done)
        gates = gx[t0 * B:(t0 + 1) * B, :] + jnp.dot(
            h_pack.astype(bf16), wp, preferred_element_type=f32)  # (B, 4*SLOT) f32

        # Gate slots start at multiples of 128 lanes -> vreg-aligned, offset-0
        # slices: no lane rotates on the serial critical path.
        i_g = jax.nn.sigmoid(gates[:, 0 * SLOT:0 * SLOT + LH])
        f_g = jax.nn.sigmoid(gates[:, 1 * SLOT:1 * SLOT + LH])
        g_g = jnp.tanh(      gates[:, 2 * SLOT:2 * SLOT + LH])
        o_g = jax.nn.sigmoid(gates[:, 3 * SLOT:3 * SLOT + LH])

        c_new = f_g * c_pack + i_g * g_g                          # f32 state math
        h_new = o_g * jnp.tanh(c_new)

        # Boundary steps: only layers lo..hi are active; keep the rest frozen.
        lo = max(0, s - T + 1)
        hi = min(s, L - 1)
        if lo == 0 and hi == L - 1:
            c_pack, h_pack = c_new, h_new
        else:
            act = (lane >= lo * H) & (lane < (hi + 1) * H)        # static mask
            c_pack = jnp.where(act, c_new, c_pack)
            h_pack = jnp.where(act, h_new, h_pack)

    # ---- final states (aliased in-place with h0 / c0) ----
    for l in range(L):
        hN_ref[l] = h_pack[:, l * H:(l + 1) * H]
        cN_ref[l] = c_pack[:, l * H:(l + 1) * H]

    # ---- final fc on top layer's last hidden state (== out[:, -1, :]) ----
    h_top = h_pack[:, (L - 1) * H:]
    out_ref[...] = jnp.dot(h_top.astype(bf16), w_fc_ref[...],
                           preferred_element_type=f32) + b_fc_ref[...]


def _full_spec(shape):
    nd = len(shape)
    return pl.BlockSpec(shape, lambda i, nd=nd: (0,) * nd)


def lstm_predictor_forward(x, hidden, params):
    """x: (B, T, input_dim); hidden = (h0, c0), each (n_layers, B, H)."""
    B, T, Din = x.shape
    h0, c0 = hidden
    L, _, H = h0.shape
    Dout = params['b_fc'].shape[-1]
    SLOT = params['w_pack'].shape[1] // 4

    # Time-major flatten: row index == t*B + b (tiny, fused by XLA).
    x_tm = jnp.transpose(x, (1, 0, 2)).reshape(T * B, Din)

    inputs = [x_tm, h0, c0,
              params['w_pre'], params['b_pre'],
              params['w_fc'], params['b_fc'],
              params['wx_pack'], params['b_pack'], params['w_pack']]

    kernel = functools.partial(_fused_kernel, L=L, T=T, B=B, H=H, SLOT=SLOT)

    out, h_n, c_n = pl.pallas_call(
        kernel,
        out_shape=(jax.ShapeDtypeStruct((B, Dout), jnp.float32),
                   jax.ShapeDtypeStruct((L, B, H), jnp.float32),
                   jax.ShapeDtypeStruct((L, B, H), jnp.float32)),
        grid=(1,),
        in_specs=[_full_spec(a.shape) for a in inputs],
        out_specs=(_full_spec((B, Dout)),
                   _full_spec((L, B, H)),
                   _full_spec((L, B, H))),
        # h0 -> h_n, c0 -> c_n: carried state updated in place across calls.
        input_output_aliases={1: 1, 2: 2},
        compiler_params=pltpu.CompilerParams(
            dimension_semantics=("arbitrary",)),
    )(*inputs)
    return out, (h_n, c_n)


# ---------------------------------------------------------------------------
# Parameter init (deterministic, PyTorch-style uniform(-k, k)).
# Weights are pre-packed for the wavefront kernel:
#   wx_pack : (16, 4*SLOT)  layer-0 W_ih scattered into gate-aligned columns
#   w_pack  : (L*H, 4*SLOT) W_hh of every layer + W_ih of layers >= 1
#   b_pack  : (1, 4*SLOT)   fused biases (b_ih + b_hh) per layer
# Gate slots follow PyTorch row-block order (i, f, g, o); each 128-lane slot
# holds layer l's gate at lanes [l*H:(l+1)*H] (rest zero).
# ---------------------------------------------------------------------------
def init_params(key, input_dim, hidden_dim, output_dim, n_layers):
    H, L = hidden_dim, n_layers
    LH = L * H
    SLOT = max(128, ((LH + 127) // 128) * 128)
    keys = jax.random.split(key, 4 + 4 * n_layers)

    def u(k, shape, bound):
        return jax.random.uniform(k, shape, jnp.float32, -bound, bound)

    k_pre = 1.0 / math.sqrt(input_dim)
    w_pre = u(keys[0], (16, input_dim), k_pre)           # PyTorch (out, in)
    b_pre = u(keys[1], (16,), k_pre)

    k_fc = 1.0 / math.sqrt(H)
    w_fc = u(keys[2], (output_dim, H), k_fc)
    b_fc = u(keys[3], (output_dim,), k_fc)

    k_l = 1.0 / math.sqrt(H)
    wx = jnp.zeros((16, 4 * SLOT), jnp.float32)
    wp = jnp.zeros((LH, 4 * SLOT), jnp.float32)
    bp = jnp.zeros((4 * SLOT,), jnp.float32)
    for l in range(L):
        in_f = 16 if l == 0 else H
        kk = keys[4 + 4 * l: 8 + 4 * l]
        w_ih = u(kk[0], (4 * H, in_f), k_l)              # PyTorch layout (i,f,g,o rows)
        w_hh = u(kk[1], (4 * H, H), k_l)
        b = u(kk[2], (4 * H,), k_l) + u(kk[3], (4 * H,), k_l)
        for gi in range(4):
            rows = slice(gi * H, (gi + 1) * H)
            col = gi * SLOT + l * H
            wp = wp.at[l * H:(l + 1) * H, col:col + H].set(w_hh[rows].T)
            bp = bp.at[col:col + H].set(b[rows])
            if l == 0:
                wx = wx.at[:, col:col + H].set(w_ih[rows].T)
            else:
                # layer l's input is layer (l-1)'s hidden -> rides the same operand
                wp = wp.at[(l - 1) * H:l * H, col:col + H].set(w_ih[rows].T)

    return {
        'w_pre': w_pre.T.astype(jnp.bfloat16),           # (Din, 16)
        'b_pre': b_pre.reshape(1, 16),
        'w_fc': w_fc.T.astype(jnp.bfloat16),             # (H, Dout)
        'b_fc': b_fc.reshape(1, output_dim),
        'wx_pack': wx.astype(jnp.bfloat16),              # (16, 4*SLOT)
        'w_pack': wp.astype(jnp.bfloat16),               # (L*H, 4*SLOT)
        'b_pack': bp.reshape(1, 4 * SLOT),
    }


if __name__ == "__main__":
    input_dim, hidden_dim, output_dim, n_layers = 4, 32, 2, 2
    B, T = 2, 8

    key = jax.random.PRNGKey(0)
    k_x, k_p = jax.random.split(key)

    x = jax.random.normal(k_x, (B, T, input_dim), dtype=jnp.float32)
    params = init_params(k_p, input_dim, hidden_dim, output_dim, n_layers)

    # init_hidden(batch_size)
    h0 = jnp.zeros((n_layers, B, hidden_dim), jnp.float32)
    c0 = jnp.zeros((n_layers, B, hidden_dim), jnp.float32)

    fwd = jax.jit(lstm_predictor_forward)
    out, (h_n, c_n) = fwd(x, (h0, c0), params)
    jax.block_until_ready((out, h_n, c_n))

    assert out.shape == (B, output_dim)
    assert h_n.shape == (n_layers, B, hidden_dim)
    assert c_n.shape == (n_layers, B, hidden_dim)
    print("KERNEL_OK")
</pallas_src>

<mosaic_0001>
module attributes {stable_mosaic.version = 11 : i64} {
  func.func @_fused_kernel(%arg0: i32, %arg1: memref<16x4xf32, #tpu.memory_space<vmem>>, %arg2: memref<2x2x32xf32, #tpu.memory_space<vmem>>, %arg3: memref<2x2x32xf32, #tpu.memory_space<vmem>>, %arg4: memref<4x16xbf16, #tpu.memory_space<vmem>>, %arg5: memref<1x16xf32, #tpu.memory_space<vmem>>, %arg6: memref<32x2xbf16, #tpu.memory_space<vmem>>, %arg7: memref<1x2xf32, #tpu.memory_space<vmem>>, %arg8: memref<16x512xbf16, #tpu.memory_space<vmem>>, %arg9: memref<1x512xf32, #tpu.memory_space<vmem>>, %arg10: memref<64x512xbf16, #tpu.memory_space<vmem>>, %arg11: memref<2x2xf32, #tpu.memory_space<vmem>>, %arg12: memref<2x2x32xf32, #tpu.memory_space<vmem>>, %arg13: memref<2x2x32xf32, #tpu.memory_space<vmem>>) attributes {dimension_semantics = [#tpu.dimension_semantics<arbitrary>], iteration_bounds = array<i64: 1>, scalar_prefetch = 0 : i64, scratch_operands = 0 : i64, tpu.core_type = #tpu.core_type<tc>, window_params = [{pipeline_mode = #tpu.pipeline_mode<synchronous>, transform_indices = @transform_0, window_bounds = array<i64: 16, 4>}, {pipeline_mode = #tpu.pipeline_mode<synchronous>, transform_indices = @transform_1, window_bounds = array<i64: 2, 2, 32>}, {pipeline_mode = #tpu.pipeline_mode<synchronous>, transform_indices = @transform_2, window_bounds = array<i64: 2, 2, 32>}, {pipeline_mode = #tpu.pipeline_mode<synchronous>, transform_indices = @transform_3, window_bounds = array<i64: 4, 16>}, {pipeline_mode = #tpu.pipeline_mode<synchronous>, transform_indices = @transform_4, window_bounds = array<i64: 1, 16>}, {pipeline_mode = #tpu.pipeline_mode<synchronous>, transform_indices = @transform_5, window_bounds = array<i64: 32, 2>}, {pipeline_mode = #tpu.pipeline_mode<synchronous>, transform_indices = @transform_6, window_bounds = array<i64: 1, 2>}, {pipeline_mode = #tpu.pipeline_mode<synchronous>, transform_indices = @transform_7, window_bounds = array<i64: 16, 512>}, {pipeline_mode = #tpu.pipeline_mode<synchronous>, transform_indices = @transform_8, window_bounds = array<i64: 1, 512>}, {pipeline_mode = #tpu.pipeline_mode<synchronous>, transform_indices = @transform_9, window_bounds = array<i64: 64, 512>}, {pipeline_mode = #tpu.pipeline_mode<synchronous>, transform_indices = @transform_10, window_bounds = array<i64: 2, 2>}, {pipeline_mode = #tpu.pipeline_mode<synchronous>, transform_indices = @transform_11, window_bounds = array<i64: 2, 2, 32>}, {pipeline_mode = #tpu.pipeline_mode<synchronous>, transform_indices = @transform_12, window_bounds = array<i64: 2, 2, 32>}]} {
    %c0 = arith.constant 0 : index
    %c0_0 = arith.constant 0 : index
    %0 = vector.load %arg1[%c0, %c0_0] : memref<16x4xf32, #tpu.memory_space<vmem>>, vector<16x4xf32>
    %1 = arith.truncf %0 : vector<16x4xf32> to vector<16x4xbf16>
    %c0_1 = arith.constant 0 : index
    %c0_2 = arith.constant 0 : index
    %2 = vector.load %arg4[%c0_1, %c0_2] : memref<4x16xbf16, #tpu.memory_space<vmem>>, vector<4x16xbf16>
    %cst = arith.constant dense<0.000000e+00> : vector<16x16xf32>
    %3 = tpu.matmul %1, %2, %cst {dimension_numbers = #tpu.dot_dimension_numbers<[1], [0], [0], [1], [0, 0, 1, 1], [], []>} : vector<16x4xbf16>, vector<4x16xbf16>, vector<16x16xf32> -> vector<16x16xf32>
    %c0_3 = arith.constant 0 : index
    %c0_4 = arith.constant 0 : index
    %4 = vector.load %arg5[%c0_3, %c0_4] : memref<1x16xf32, #tpu.memory_space<vmem>>, vector<1x16xf32>
    %5 = vector.broadcast %4 : vector<1x16xf32> to vector<16x16xf32>
    %6 = arith.addf %3, %5 : vector<16x16xf32>
    %cst_5 = arith.constant 0.000000e+00 : f32
    %7 = vector.broadcast %cst_5 : f32 to vector<16x16xf32>
    %8 = arith.maximumf %6, %7 : vector<16x16xf32>
    %9 = arith.truncf %8 : vector<16x16xf32> to vector<16x16xbf16>
    %c0_6 = arith.constant 0 : index
    %c0_7 = arith.constant 0 : index
    %10 = vector.load %arg8[%c0_6, %c0_7] : memref<16x512xbf16, #tpu.memory_space<vmem>>, vector<16x512xbf16>
    %cst_8 = arith.constant dense<0.000000e+00> : vector<16x512xf32>
    %11 = tpu.matmul %9, %10, %cst_8 {dimension_numbers = #tpu.dot_dimension_numbers<[1], [0], [0], [1], [0, 0, 1, 1], [], []>} : vector<16x16xbf16>, vector<16x512xbf16>, vector<16x512xf32> -> vector<16x512xf32>
    %c0_9 = arith.constant 0 : index
    %c0_10 = arith.constant 0 : index
    %12 = vector.load %arg9[%c0_9, %c0_10] : memref<1x512xf32, #tpu.memory_space<vmem>>, vector<1x512xf32>
    %13 = vector.broadcast %12 : vector<1x512xf32> to vector<16x512xf32>
    %14 = arith.addf %11, %13 : vector<16x512xf32>
    %c0_11 = arith.constant 0 : index
    %c0_12 = arith.constant 0 : index
    %c0_13 = arith.constant 0 : index
    %15 = vector.load %arg2[%c0_11, %c0_12, %c0_13] : memref<2x2x32xf32, #tpu.memory_space<vmem>>, vector<1x2x32xf32>
    %16 = vector.shape_cast %15 : vector<1x2x32xf32> to vector<2x32xf32>
    %c1 = arith.constant 1 : index
    %c0_14 = arith.constant 0 : index
    %c0_15 = arith.constant 0 : index
    %17 = vector.load %arg2[%c1, %c0_14, %c0_15] : memref<2x2x32xf32, #tpu.memory_space<vmem>>, vector<1x2x32xf32>
    %18 = vector.shape_cast %17 : vector<1x2x32xf32> to vector<2x32xf32>
    %19 = tpu.concatenate %16, %18 in 1 : vector<2x32xf32>, vector<2x32xf32> -> vector<2x64xf32>
    %c0_16 = arith.constant 0 : index
    %c0_17 = arith.constant 0 : index
    %c0_18 = arith.constant 0 : index
    %20 = vector.load %arg3[%c0_16, %c0_17, %c0_18] : memref<2x2x32xf32, #tpu.memory_space<vmem>>, vector<1x2x32xf32>
    %21 = vector.shape_cast %20 : vector<1x2x32xf32> to vector<2x32xf32>
    %c1_19 = arith.constant 1 : index
    %c0_20 = arith.constant 0 : index
    %c0_21 = arith.constant 0 : index
    %22 = vector.load %arg3[%c1_19, %c0_20, %c0_21] : memref<2x2x32xf32, #tpu.memory_space<vmem>>, vector<1x2x32xf32>
    %23 = vector.shape_cast %22 : vector<1x2x32xf32> to vector<2x32xf32>
    %24 = tpu.concatenate %21, %23 in 1 : vector<2x32xf32>, vector<2x32xf32> -> vector<2x64xf32>
    %25 = tpu.iota {dimensions = array<i32: 1>} : vector<2x64xi32>
    %c0_22 = arith.constant 0 : index
    %c0_23 = arith.constant 0 : index
    %26 = vector.load %arg10[%c0_22, %c0_23] : memref<64x512xbf16, #tpu.memory_space<vmem>>, vector<64x512xbf16>
    %27 = vector.extract_strided_slice %14 {offsets = [0, 0], sizes = [2, 512], strides = [1, 1]} : vector<16x512xf32> to vector<2x512xf32>
    %28 = arith.truncf %19 : vector<2x64xf32> to vector<2x64xbf16>
    %cst_24 = arith.constant dense<0.000000e+00> : vector<2x512xf32>
    %29 = tpu.matmul %28, %26, %cst_24 {dimension_numbers = #tpu.dot_dimension_numbers<[1], [0], [0], [1], [0, 0, 1, 1], [], []>} : vector<2x64xbf16>, vector<64x512xbf16>, vector<2x512xf32> -> vector<2x512xf32>
    %30 = arith.addf %27, %29 : vector<2x512xf32>
    %31 = vector.extract_strided_slice %30 {offsets = [0, 0], sizes = [2, 64], strides = [1, 1]} : vector<2x512xf32> to vector<2x64xf32>
    %32 = arith.negf %31 : vector<2x64xf32>
    %33 = math.exp %32 : vector<2x64xf32>
    %cst_25 = arith.constant 1.000000e+00 : f32
    %34 = vector.broadcast %cst_25 : f32 to vector<2x64xf32>
    %35 = arith.addf %34, %33 : vector<2x64xf32>
    %36 = arith.divf %34, %35 : vector<2x64xf32>
    %37 = vector.extract_strided_slice %30 {offsets = [0, 128], sizes = [2, 64], strides = [1, 1]} : vector<2x512xf32> to vector<2x64xf32>
    %38 = arith.negf %37 : vector<2x64xf32>
    %39 = math.exp %38 : vector<2x64xf32>
    %cst_26 = arith.constant 1.000000e+00 : f32
    %40 = vector.broadcast %cst_26 : f32 to vector<2x64xf32>
    %41 = arith.addf %40, %39 : vector<2x64xf32>
    %42 = arith.divf %40, %41 : vector<2x64xf32>
    %43 = vector.extract_strided_slice %30 {offsets = [0, 256], sizes = [2, 64], strides = [1, 1]} : vector<2x512xf32> to vector<2x64xf32>
    %44 = math.tanh %43 : vector<2x64xf32>
    %45 = vector.extract_strided_slice %30 {offsets = [0, 384], sizes = [2, 64], strides = [1, 1]} : vector<2x512xf32> to vector<2x64xf32>
    %46 = arith.negf %45 : vector<2x64xf32>
    %47 = math.exp %46 : vector<2x64xf32>
    %cst_27 = arith.constant 1.000000e+00 : f32
    %48 = vector.broadcast %cst_27 : f32 to vector<2x64xf32>
    %49 = arith.addf %48, %47 : vector<2x64xf32>
    %50 = arith.divf %48, %49 : vector<2x64xf32>
    %51 = arith.mulf %42, %24 : vector<2x64xf32>
    %52 = arith.mulf %36, %44 : vector<2x64xf32>
    %53 = arith.addf %51, %52 : vector<2x64xf32>
    %54 = math.tanh %53 : vector<2x64xf32>
    %55 = arith.mulf %50, %54 : vector<2x64xf32>
    %c0_i32 = arith.constant 0 : i32
    %56 = vector.broadcast %c0_i32 : i32 to vector<2x64xi32>
    %57 = arith.cmpi sge, %25, %56 : vector<2x64xi32>
    %c32_i32 = arith.constant 32 : i32
    %58 = vector.broadcast %c32_i32 : i32 to vector<2x64xi32>
    %59 = arith.cmpi slt, %25, %58 : vector<2x64xi32>
    %60 = arith.andi %57, %59 : vector<2x64xi1>
    %61 = arith.select %60, %53, %24 : vector<2x64xi1>, vector<2x64xf32>
    %62 = arith.select %60, %55, %19 : vector<2x64xi1>, vector<2x64xf32>
    %63 = vector.extract_strided_slice %14 {offsets = [2, 0], sizes = [2, 512], strides = [1, 1]} : vector<16x512xf32> to vector<2x512xf32>
    %64 = arith.truncf %62 : vector<2x64xf32> to vector<2x64xbf16>
    %cst_28 = arith.constant dense<0.000000e+00> : vector<2x512xf32>
    %65 = tpu.matmul %64, %26, %cst_28 {dimension_numbers = #tpu.dot_dimension_numbers<[1], [0], [0], [1], [0, 0, 1, 1], [], []>} : vector<2x64xbf16>, vector<64x512xbf16>, vector<2x512xf32> -> vector<2x512xf32>
    %66 = arith.addf %63, %65 : vector<2x512xf32>
    %67 = vector.extract_strided_slice %66 {offsets = [0, 0], sizes = [2, 64], strides = [1, 1]} : vector<2x512xf32> to vector<2x64xf32>
    %68 = arith.negf %67 : vector<2x64xf32>
    %69 = math.exp %68 : vector<2x64xf32>
    %cst_29 = arith.constant 1.000000e+00 : f32
    %70 = vector.broadcast %cst_29 : f32 to vector<2x64xf32>
    %71 = arith.addf %70, %69 : vector<2x64xf32>
    %72 = arith.divf %70, %71 : vector<2x64xf32>
    %73 = vector.extract_strided_slice %66 {offsets = [0, 128], sizes = [2, 64], strides = [1, 1]} : vector<2x512xf32> to vector<2x64xf32>
    %74 = arith.negf %73 : vector<2x64xf32>
    %75 = math.exp %74 : vector<2x64xf32>
    %cst_30 = arith.constant 1.000000e+00 : f32
    %76 = vector.broadcast %cst_30 : f32 to vector<2x64xf32>
    %77 = arith.addf %76, %75 : vector<2x64xf32>
    %78 = arith.divf %76, %77 : vector<2x64xf32>
    %79 = vector.extract_strided_slice %66 {offsets = [0, 256], sizes = [2, 64], strides = [1, 1]} : vector<2x512xf32> to vector<2x64xf32>
    %80 = math.tanh %79 : vector<2x64xf32>
    %81 = vector.extract_strided_slice %66 {offsets = [0, 384], sizes = [2, 64], strides = [1, 1]} : vector<2x512xf32> to vector<2x64xf32>
    %82 = arith.negf %81 : vector<2x64xf32>
    %83 = math.exp %82 : vector<2x64xf32>
    %cst_31 = arith.constant 1.000000e+00 : f32
    %84 = vector.broadcast %cst_31 : f32 to vector<2x64xf32>
    %85 = arith.addf %84, %83 : vector<2x64xf32>
    %86 = arith.divf %84, %85 : vector<2x64xf32>
    %87 = arith.mulf %78, %61 : vector<2x64xf32>
    %88 = arith.mulf %72, %80 : vector<2x64xf32>
    %89 = arith.addf %87, %88 : vector<2x64xf32>
    %90 = math.tanh %89 : vector<2x64xf32>
    %91 = arith.mulf %86, %90 : vector<2x64xf32>
    %92 = vector.extract_strided_slice %14 {offsets = [4, 0], sizes = [2, 512], strides = [1, 1]} : vector<16x512xf32> to vector<2x512xf32>
    %93 = arith.truncf %91 : vector<2x64xf32> to vector<2x64xbf16>
    %cst_32 = arith.constant dense<0.000000e+00> : vector<2x512xf32>
    %94 = tpu.matmul %93, %26, %cst_32 {dimension_numbers = #tpu.dot_dimension_numbers<[1], [0], [0], [1], [0, 0, 1, 1], [], []>} : vector<2x64xbf16>, vector<64x512xbf16>, vector<2x512xf32> -> vector<2x512xf32>
    %95 = arith.addf %92, %94 : vector<2x512xf32>
    %96 = vector.extract_strided_slice %95 {offsets = [0, 0], sizes = [2, 64], strides = [1, 1]} : vector<2x512xf32> to vector<2x64xf32>
    %97 = arith.negf %96 : vector<2x64xf32>
    %98 = math.exp %97 : vector<2x64xf32>
    %cst_33 = arith.constant 1.000000e+00 : f32
    %99 = vector.broadcast %cst_33 : f32 to vector<2x64xf32>
    %100 = arith.addf %99, %98 : vector<2x64xf32>
    %101 = arith.divf %99, %100 : vector<2x64xf32>
    %102 = vector.extract_strided_slice %95 {offsets = [0, 128], sizes = [2, 64], strides = [1, 1]} : vector<2x512xf32> to vector<2x64xf32>
    %103 = arith.negf %102 : vector<2x64xf32>
    %104 = math.exp %103 : vector<2x64xf32>
    %cst_34 = arith.constant 1.000000e+00 : f32
    %105 = vector.broadcast %cst_34 : f32 to vector<2x64xf32>
    %106 = arith.addf %105, %104 : vector<2x64xf32>
    %107 = arith.divf %105, %106 : vector<2x64xf32>
    %108 = vector.extract_strided_slice %95 {offsets = [0, 256], sizes = [2, 64], strides = [1, 1]} : vector<2x512xf32> to vector<2x64xf32>
    %109 = math.tanh %108 : vector<2x64xf32>
    %110 = vector.extract_strided_slice %95 {offsets = [0, 384], sizes = [2, 64], strides = [1, 1]} : vector<2x512xf32> to vector<2x64xf32>
    %111 = arith.negf %110 : vector<2x64xf32>
    %112 = math.exp %111 : vector<2x64xf32>
    %cst_35 = arith.constant 1.000000e+00 : f32
    %113 = vector.broadcast %cst_35 : f32 to vector<2x64xf32>
    %114 = arith.addf %113, %112 : vector<2x64xf32>
    %115 = arith.divf %113, %114 : vector<2x64xf32>
    %116 = arith.mulf %107, %89 : vector<2x64xf32>
    %117 = arith.mulf %101, %109 : vector<2x64xf32>
    %118 = arith.addf %116, %117 : vector<2x64xf32>
    %119 = math.tanh %118 : vector<2x64xf32>
    %120 = arith.mulf %115, %119 : vector<2x64xf32>
    %121 = vector.extract_strided_slice %14 {offsets = [6, 0], sizes = [2, 512], strides = [1, 1]} : vector<16x512xf32> to vector<2x512xf32>
    %122 = arith.truncf %120 : vector<2x64xf32> to vector<2x64xbf16>
    %cst_36 = arith.constant dense<0.000000e+00> : vector<2x512xf32>
    %123 = tpu.matmul %122, %26, %cst_36 {dimension_numbers = #tpu.dot_dimension_numbers<[1], [0], [0], [1], [0, 0, 1, 1], [], []>} : vector<2x64xbf16>, vector<64x512xbf16>, vector<2x512xf32> -> vector<2x512xf32>
    %124 = arith.addf %121, %123 : vector<2x512xf32>
    %125 = vector.extract_strided_slice %124 {offsets = [0, 0], sizes = [2, 64], strides = [1, 1]} : vector<2x512xf32> to vector<2x64xf32>
    %126 = arith.negf %125 : vector<2x64xf32>
    %127 = math.exp %126 : vector<2x64xf32>
    %cst_37 = arith.constant 1.000000e+00 : f32
    %128 = vector.broadcast %cst_37 : f32 to vector<2x64xf32>
    %129 = arith.addf %128, %127 : vector<2x64xf32>
    %130 = arith.divf %128, %129 : vector<2x64xf32>
    %131 = vector.extract_strided_slice %124 {offsets = [0, 128], sizes = [2, 64], strides = [1, 1]} : vector<2x512xf32> to vector<2x64xf32>
    %132 = arith.negf %131 : vector<2x64xf32>
    %133 = math.exp %132 : vector<2x64xf32>
    %cst_38 = arith.constant 1.000000e+00 : f32
    %134 = vector.broadcast %cst_38 : f32 to vector<2x64xf32>
    %135 = arith.addf %134, %133 : vector<2x64xf32>
    %136 = arith.divf %134, %135 : vector<2x64xf32>
    %137 = vector.extract_strided_slice %124 {offsets = [0, 256], sizes = [2, 64], strides = [1, 1]} : vector<2x512xf32> to vector<2x64xf32>
    %138 = math.tanh %137 : vector<2x64xf32>
    %139 = vector.extract_strided_slice %124 {offsets = [0, 384], sizes = [2, 64], strides = [1, 1]} : vector<2x512xf32> to vector<2x64xf32>
    %140 = arith.negf %139 : vector<2x64xf32>
    %141 = math.exp %140 : vector<2x64xf32>
    %cst_39 = arith.constant 1.000000e+00 : f32
    %142 = vector.broadcast %cst_39 : f32 to vector<2x64xf32>
    %143 = arith.addf %142, %141 : vector<2x64xf32>
    %144 = arith.divf %142, %143 : vector<2x64xf32>
    %145 = arith.mulf %136, %118 : vector<2x64xf32>
    %146 = arith.mulf %130, %138 : vector<2x64xf32>
    %147 = arith.addf %145, %146 : vector<2x64xf32>
    %148 = math.tanh %147 : vector<2x64xf32>
    %149 = arith.mulf %144, %148 : vector<2x64xf32>
    %150 = vector.extract_strided_slice %14 {offsets = [8, 0], sizes = [2, 512], strides = [1, 1]} : vector<16x512xf32> to vector<2x512xf32>
    %151 = arith.truncf %149 : vector<2x64xf32> to vector<2x64xbf16>
    %cst_40 = arith.constant dense<0.000000e+00> : vector<2x512xf32>
    %152 = tpu.matmul %151, %26, %cst_40 {dimension_numbers = #tpu.dot_dimension_numbers<[1], [0], [0], [1], [0, 0, 1, 1], [], []>} : vector<2x64xbf16>, vector<64x512xbf16>, vector<2x512xf32> -> vector<2x512xf32>
    %153 = arith.addf %150, %152 : vector<2x512xf32>
    %154 = vector.extract_strided_slice %153 {offsets = [0, 0], sizes = [2, 64], strides = [1, 1]} : vector<2x512xf32> to vector<2x64xf32>
    %155 = arith.negf %154 : vector<2x64xf32>
    %156 = math.exp %155 : vector<2x64xf32>
    %cst_41 = arith.constant 1.000000e+00 : f32
    %157 = vector.broadcast %cst_41 : f32 to vector<2x64xf32>
    %158 = arith.addf %157, %156 : vector<2x64xf32>
    %159 = arith.divf %157, %158 : vector<2x64xf32>
    %160 = vector.extract_strided_slice %153 {offsets = [0, 128], sizes = [2, 64], strides = [1, 1]} : vector<2x512xf32> to vector<2x64xf32>
    %161 = arith.negf %160 : vector<2x64xf32>
    %162 = math.exp %161 : vector<2x64xf32>
    %cst_42 = arith.constant 1.000000e+00 : f32
    %163 = vector.broadcast %cst_42 : f32 to vector<2x64xf32>
    %164 = arith.addf %163, %162 : vector<2x64xf32>
    %165 = arith.divf %163, %164 : vector<2x64xf32>
    %166 = vector.extract_strided_slice %153 {offsets = [0, 256], sizes = [2, 64], strides = [1, 1]} : vector<2x512xf32> to vector<2x64xf32>
    %167 = math.tanh %166 : vector<2x64xf32>
    %168 = vector.extract_strided_slice %153 {offsets = [0, 384], sizes = [2, 64], strides = [1, 1]} : vector<2x512xf32> to vector<2x64xf32>
    %169 = arith.negf %168 : vector<2x64xf32>
    %170 = math.exp %169 : vector<2x64xf32>
    %cst_43 = arith.constant 1.000000e+00 : f32
    %171 = vector.broadcast %cst_43 : f32 to vector<2x64xf32>
    %172 = arith.addf %171, %170 : vector<2x64xf32>
    %173 = arith.divf %171, %172 : vector<2x64xf32>
    %174 = arith.mulf %165, %147 : vector<2x64xf32>
    %175 = arith.mulf %159, %167 : vector<2x64xf32>
    %176 = arith.addf %174, %175 : vector<2x64xf32>
    %177 = math.tanh %176 : vector<2x64xf32>
    %178 = arith.mulf %173, %177 : vector<2x64xf32>
    %179 = vector.extract_strided_slice %14 {offsets = [10, 0], sizes = [2, 512], strides = [1, 1]} : vector<16x512xf32> to vector<2x512xf32>
    %180 = arith.truncf %178 : vector<2x64xf32> to vector<2x64xbf16>
    %cst_44 = arith.constant dense<0.000000e+00> : vector<2x512xf32>
    %181 = tpu.matmul %180, %26, %cst_44 {dimension_numbers = #tpu.dot_dimension_numbers<[1], [0], [0], [1], [0, 0, 1, 1], [], []>} : vector<2x64xbf16>, vector<64x512xbf16>, vector<2x512xf32> -> vector<2x512xf32>
    %182 = arith.addf %179, %181 : vector<2x512xf32>
    %183 = vector.extract_strided_slice %182 {offsets = [0, 0], sizes = [2, 64], strides = [1, 1]} : vector<2x512xf32> to vector<2x64xf32>
    %184 = arith.negf %183 : vector<2x64xf32>
    %185 = math.exp %184 : vector<2x64xf32>
    %cst_45 = arith.constant 1.000000e+00 : f32
    %186 = vector.broadcast %cst_45 : f32 to vector<2x64xf32>
    %187 = arith.addf %186, %185 : vector<2x64xf32>
    %188 = arith.divf %186, %187 : vector<2x64xf32>
    %189 = vector.extract_strided_slice %182 {offsets = [0, 128], sizes = [2, 64], strides = [1, 1]} : vector<2x512xf32> to vector<2x64xf32>
    %190 = arith.negf %189 : vector<2x64xf32>
    %191 = math.exp %190 : vector<2x64xf32>
    %cst_46 = arith.constant 1.000000e+00 : f32
    %192 = vector.broadcast %cst_46 : f32 to vector<2x64xf32>
    %193 = arith.addf %192, %191 : vector<2x64xf32>
    %194 = arith.divf %192, %193 : vector<2x64xf32>
    %195 = vector.extract_strided_slice %182 {offsets = [0, 256], sizes = [2, 64], strides = [1, 1]} : vector<2x512xf32> to vector<2x64xf32>
    %196 = math.tanh %195 : vector<2x64xf32>
    %197 = vector.extract_strided_slice %182 {offsets = [0, 384], sizes = [2, 64], strides = [1, 1]} : vector<2x512xf32> to vector<2x64xf32>
    %198 = arith.negf %197 : vector<2x64xf32>
    %199 = math.exp %198 : vector<2x64xf32>
    %cst_47 = arith.constant 1.000000e+00 : f32
    %200 = vector.broadcast %cst_47 : f32 to vector<2x64xf32>
    %201 = arith.addf %200, %199 : vector<2x64xf32>
    %202 = arith.divf %200, %201 : vector<2x64xf32>
    %203 = arith.mulf %194, %176 : vector<2x64xf32>
    %204 = arith.mulf %188, %196 : vector<2x64xf32>
    %205 = arith.addf %203, %204 : vector<2x64xf32>
    %206 = math.tanh %205 : vector<2x64xf32>
    %207 = arith.mulf %202, %206 : vector<2x64xf32>
    %208 = vector.extract_strided_slice %14 {offsets = [12, 0], sizes = [2, 512], strides = [1, 1]} : vector<16x512xf32> to vector<2x512xf32>
    %209 = arith.truncf %207 : vector<2x64xf32> to vector<2x64xbf16>
    %cst_48 = arith.constant dense<0.000000e+00> : vector<2x512xf32>
    %210 = tpu.matmul %209, %26, %cst_48 {dimension_numbers = #tpu.dot_dimension_numbers<[1], [0], [0], [1], [0, 0, 1, 1], [], []>} : vector<2x64xbf16>, vector<64x512xbf16>, vector<2x512xf32> -> vector<2x512xf32>
    %211 = arith.addf %208, %210 : vector<2x512xf32>
    %212 = vector.extract_strided_slice %211 {offsets = [0, 0], sizes = [2, 64], strides = [1, 1]} : vector<2x512xf32> to vector<2x64xf32>
    %213 = arith.negf %212 : vector<2x64xf32>
    %214 = math.exp %213 : vector<2x64xf32>
    %cst_49 = arith.constant 1.000000e+00 : f32
    %215 = vector.broadcast %cst_49 : f32 to vector<2x64xf32>
    %216 = arith.addf %215, %214 : vector<2x64xf32>
    %217 = arith.divf %215, %216 : vector<2x64xf32>
    %218 = vector.extract_strided_slice %211 {offsets = [0, 128], sizes = [2, 64], strides = [1, 1]} : vector<2x512xf32> to vector<2x64xf32>
    %219 = arith.negf %218 : vector<2x64xf32>
    %220 = math.exp %219 : vector<2x64xf32>
    %cst_50 = arith.constant 1.000000e+00 : f32
    %221 = vector.broadcast %cst_50 : f32 to vector<2x64xf32>
    %222 = arith.addf %221, %220 : vector<2x64xf32>
    %223 = arith.divf %221, %222 : vector<2x64xf32>
    %224 = vector.extract_strided_slice %211 {offsets = [0, 256], sizes = [2, 64], strides = [1, 1]} : vector<2x512xf32> to vector<2x64xf32>
    %225 = math.tanh %224 : vector<2x64xf32>
    %226 = vector.extract_strided_slice %211 {offsets = [0, 384], sizes = [2, 64], strides = [1, 1]} : vector<2x512xf32> to vector<2x64xf32>
    %227 = arith.negf %226 : vector<2x64xf32>
    %228 = math.exp %227 : vector<2x64xf32>
    %cst_51 = arith.constant 1.000000e+00 : f32
    %229 = vector.broadcast %cst_51 : f32 to vector<2x64xf32>
    %230 = arith.addf %229, %228 : vector<2x64xf32>
    %231 = arith.divf %229, %230 : vector<2x64xf32>
    %232 = arith.mulf %223, %205 : vector<2x64xf32>
    %233 = arith.mulf %217, %225 : vector<2x64xf32>
    %234 = arith.addf %232, %233 : vector<2x64xf32>
    %235 = math.tanh %234 : vector<2x64xf32>
    %236 = arith.mulf %231, %235 : vector<2x64xf32>
    %237 = vector.extract_strided_slice %14 {offsets = [14, 0], sizes = [2, 512], strides = [1, 1]} : vector<16x512xf32> to vector<2x512xf32>
    %238 = arith.truncf %236 : vector<2x64xf32> to vector<2x64xbf16>
    %cst_52 = arith.constant dense<0.000000e+00> : vector<2x512xf32>
    %239 = tpu.matmul %238, %26, %cst_52 {dimension_numbers = #tpu.dot_dimension_numbers<[1], [0], [0], [1], [0, 0, 1, 1], [], []>} : vector<2x64xbf16>, vector<64x512xbf16>, vector<2x512xf32> -> vector<2x512xf32>
    %240 = arith.addf %237, %239 : vector<2x512xf32>
    %241 = vector.extract_strided_slice %240 {offsets = [0, 0], sizes = [2, 64], strides = [1, 1]} : vector<2x512xf32> to vector<2x64xf32>
    %242 = arith.negf %241 : vector<2x64xf32>
    %243 = math.exp %242 : vector<2x64xf32>
    %cst_53 = arith.constant 1.000000e+00 : f32
    %244 = vector.broadcast %cst_53 : f32 to vector<2x64xf32>
    %245 = arith.addf %244, %243 : vector<2x64xf32>
    %246 = arith.divf %244, %245 : vector<2x64xf32>
    %247 = vector.extract_strided_slice %240 {offsets = [0, 128], sizes = [2, 64], strides = [1, 1]} : vector<2x512xf32> to vector<2x64xf32>
    %248 = arith.negf %247 : vector<2x64xf32>
    %249 = math.exp %248 : vector<2x64xf32>
    %cst_54 = arith.constant 1.000000e+00 : f32
    %250 = vector.broadcast %cst_54 : f32 to vector<2x64xf32>
    %251 = arith.addf %250, %249 : vector<2x64xf32>
    %252 = arith.divf %250, %251 : vector<2x64xf32>
    %253 = vector.extract_strided_slice %240 {offsets = [0, 256], sizes = [2, 64], strides = [1, 1]} : vector<2x512xf32> to vector<2x64xf32>
    %254 = math.tanh %253 : vector<2x64xf32>
    %255 = vector.extract_strided_slice %240 {offsets = [0, 384], sizes = [2, 64], strides = [1, 1]} : vector<2x512xf32> to vector<2x64xf32>
    %256 = arith.negf %255 : vector<2x64xf32>
    %257 = math.exp %256 : vector<2x64xf32>
    %cst_55 = arith.constant 1.000000e+00 : f32
    %258 = vector.broadcast %cst_55 : f32 to vector<2x64xf32>
    %259 = arith.addf %258, %257 : vector<2x64xf32>
    %260 = arith.divf %258, %259 : vector<2x64xf32>
    %261 = arith.mulf %252, %234 : vector<2x64xf32>
    %262 = arith.mulf %246, %254 : vector<2x64xf32>
    %263 = arith.addf %261, %262 : vector<2x64xf32>
    %264 = math.tanh %263 : vector<2x64xf32>
    %265 = arith.mulf %260, %264 : vector<2x64xf32>
    %266 = vector.extract_strided_slice %14 {offsets = [14, 0], sizes = [2, 512], strides = [1, 1]} : vector<16x512xf32> to vector<2x512xf32>
    %267 = arith.truncf %265 : vector<2x64xf32> to vector<2x64xbf16>
    %cst_56 = arith.constant dense<0.000000e+00> : vector<2x512xf32>
    %268 = tpu.matmul %267, %26, %cst_56 {dimension_numbers = #tpu.dot_dimension_numbers<[1], [0], [0], [1], [0, 0, 1, 1], [], []>} : vector<2x64xbf16>, vector<64x512xbf16>, vector<2x512xf32> -> vector<2x512xf32>
    %269 = arith.addf %266, %268 : vector<2x512xf32>
    %270 = vector.extract_strided_slice %269 {offsets = [0, 0], sizes = [2, 64], strides = [1, 1]} : vector<2x512xf32> to vector<2x64xf32>
    %271 = arith.negf %270 : vector<2x64xf32>
    %272 = math.exp %271 : vector<2x64xf32>
    %cst_57 = arith.constant 1.000000e+00 : f32
    %273 = vector.broadcast %cst_57 : f32 to vector<2x64xf32>
    %274 = arith.addf %273, %272 : vector<2x64xf32>
    %275 = arith.divf %273, %274 : vector<2x64xf32>
    %276 = vector.extract_strided_slice %269 {offsets = [0, 128], sizes = [2, 64], strides = [1, 1]} : vector<2x512xf32> to vector<2x64xf32>
    %277 = arith.negf %276 : vector<2x64xf32>
    %278 = math.exp %277 : vector<2x64xf32>
    %cst_58 = arith.constant 1.000000e+00 : f32
    %279 = vector.broadcast %cst_58 : f32 to vector<2x64xf32>
    %280 = arith.addf %279, %278 : vector<2x64xf32>
    %281 = arith.divf %279, %280 : vector<2x64xf32>
    %282 = vector.extract_strided_slice %269 {offsets = [0, 256], sizes = [2, 64], strides = [1, 1]} : vector<2x512xf32> to vector<2x64xf32>
    %283 = math.tanh %282 : vector<2x64xf32>
    %284 = vector.extract_strided_slice %269 {offsets = [0, 384], sizes = [2, 64], strides = [1, 1]} : vector<2x512xf32> to vector<2x64xf32>
    %285 = arith.negf %284 : vector<2x64xf32>
    %286 = math.exp %285 : vector<2x64xf32>
    %cst_59 = arith.constant 1.000000e+00 : f32
    %287 = vector.broadcast %cst_59 : f32 to vector<2x64xf32>
    %288 = arith.addf %287, %286 : vector<2x64xf32>
    %289 = arith.divf %287, %288 : vector<2x64xf32>
    %290 = arith.mulf %281, %263 : vector<2x64xf32>
    %291 = arith.mulf %275, %283 : vector<2x64xf32>
    %292 = arith.addf %290, %291 : vector<2x64xf32>
    %293 = math.tanh %292 : vector<2x64xf32>
    %294 = arith.mulf %289, %293 : vector<2x64xf32>
    %c32_i32_60 = arith.constant 32 : i32
    %295 = vector.broadcast %c32_i32_60 : i32 to vector<2x64xi32>
    %296 = arith.cmpi sge, %25, %295 : vector<2x64xi32>
    %c64_i32 = arith.constant 64 : i32
    %297 = vector.broadcast %c64_i32 : i32 to vector<2x64xi32>
    %298 = arith.cmpi slt, %25, %297 : vector<2x64xi32>
    %299 = arith.andi %296, %298 : vector<2x64xi1>
    %300 = arith.select %299, %292, %263 : vector<2x64xi1>, vector<2x64xf32>
    %301 = arith.select %299, %294, %265 : vector<2x64xi1>, vector<2x64xf32>
    %302 = vector.extract_strided_slice %301 {offsets = [0, 0], sizes = [2, 32], strides = [1, 1]} : vector<2x64xf32> to vector<2x32xf32>
    %c0_61 = arith.constant 0 : index
    %c0_62 = arith.constant 0 : index
    %c0_63 = arith.constant 0 : index
    %303 = vector.load %arg12[%c0_61, %c0_62, %c0_63] : memref<2x2x32xf32, #tpu.memory_space<vmem>>, vector<1x2x32xf32>
    %304 = vector.shape_cast %303 : vector<1x2x32xf32> to vector<2x32xf32>
    %305 = vector.shape_cast %302 : vector<2x32xf32> to vector<1x2x32xf32>
    tpu.vector_store %arg12[%c0_61, %c0_62, %c0_63], %305 {strides = array<i32>} : memref<2x2x32xf32, #tpu.memory_space<vmem>>, vector<1x2x32xf32>,
    %306 = vector.extract_strided_slice %300 {offsets = [0, 0], sizes = [2, 32], strides = [1, 1]} : vector<2x64xf32> to vector<2x32xf32>
    %c0_64 = arith.constant 0 : index
    %c0_65 = arith.constant 0 : index
    %c0_66 = arith.constant 0 : index
    %307 = vector.load %arg13[%c0_64, %c0_65, %c0_66] : memref<2x2x32xf32, #tpu.memory_space<vmem>>, vector<1x2x32xf32>
    %308 = vector.shape_cast %307 : vector<1x2x32xf32> to vector<2x32xf32>
    %309 = vector.shape_cast %306 : vector<2x32xf32> to vector<1x2x32xf32>
    tpu.vector_store %arg13[%c0_64, %c0_65, %c0_66], %309 {strides = array<i32>} : memref<2x2x32xf32, #tpu.memory_space<vmem>>, vector<1x2x32xf32>,
    %310 = vector.extract_strided_slice %301 {offsets = [0, 32], sizes = [2, 32], strides = [1, 1]} : vector<2x64xf32> to vector<2x32xf32>
    %c1_67 = arith.constant 1 : index
    %c0_68 = arith.constant 0 : index
    %c0_69 = arith.constant 0 : index
    %311 = vector.load %arg12[%c1_67, %c0_68, %c0_69] : memref<2x2x32xf32, #tpu.memory_space<vmem>>, vector<1x2x32xf32>
    %312 = vector.shape_cast %311 : vector<1x2x32xf32> to vector<2x32xf32>
    %313 = vector.shape_cast %310 : vector<2x32xf32> to vector<1x2x32xf32>
    tpu.vector_store %arg12[%c1_67, %c0_68, %c0_69], %313 {strides = array<i32>} : memref<2x2x32xf32, #tpu.memory_space<vmem>>, vector<1x2x32xf32>,
    %314 = vector.extract_strided_slice %300 {offsets = [0, 32], sizes = [2, 32], strides = [1, 1]} : vector<2x64xf32> to vector<2x32xf32>
    %c1_70 = arith.constant 1 : index
    %c0_71 = arith.constant 0 : index
    %c0_72 = arith.constant 0 : index
    %315 = vector.load %arg13[%c1_70, %c0_71, %c0_72] : memref<2x2x32xf32, #tpu.memory_space<vmem>>, vector<1x2x32xf32>
    %316 = vector.shape_cast %315 : vector<1x2x32xf32> to vector<2x32xf32>
    %317 = vector.shape_cast %314 : vector<2x32xf32> to vector<1x2x32xf32>
    tpu.vector_store %arg13[%c1_70, %c0_71, %c0_72], %317 {strides = array<i32>} : memref<2x2x32xf32, #tpu.memory_space<vmem>>, vector<1x2x32xf32>,
    %318 = vector.extract_strided_slice %301 {offsets = [0, 32], sizes = [2, 32], strides = [1, 1]} : vector<2x64xf32> to vector<2x32xf32>
    %319 = arith.truncf %318 : vector<2x32xf32> to vector<2x32xbf16>
    %c0_73 = arith.constant 0 : index
    %c0_74 = arith.constant 0 : index
    %320 = vector.load %arg6[%c0_73, %c0_74] : memref<32x2xbf16, #tpu.memory_space<vmem>>, vector<32x2xbf16>
    %cst_75 = arith.constant dense<0.000000e+00> : vector<2x2xf32>
    %321 = tpu.matmul %319, %320, %cst_75 {dimension_numbers = #tpu.dot_dimension_numbers<[1], [0], [0], [1], [0, 0, 1, 1], [], []>} : vector<2x32xbf16>, vector<32x2xbf16>, vector<2x2xf32> -> vector<2x2xf32>
    %c0_76 = arith.constant 0 : index
    %c0_77 = arith.constant 0 : index
    %322 = vector.load %arg7[%c0_76, %c0_77] : memref<1x2xf32, #tpu.memory_space<vmem>>, vector<1x2xf32>
    %323 = vector.broadcast %322 : vector<1x2xf32> to vector<2x2xf32>
    %324 = arith.addf %321, %323 : vector<2x2xf32>
    %c0_78 = arith.constant 0 : index
    %c0_79 = arith.constant 0 : index
    %325 = vector.load %arg11[%c0_78, %c0_79] : memref<2x2xf32, #tpu.memory_space<vmem>>, vector<2x2xf32>
    tpu.vector_store %arg11[%c0_78, %c0_79], %324 {strides = array<i32>} : memref<2x2xf32, #tpu.memory_space<vmem>>, vector<2x2xf32>,
    return
  }
  func.func @transform_0(%arg0: i32) -> (i32, i32) {
    %c0_i32 = arith.constant 0 : i32
    %c0_i32_0 = arith.constant 0 : i32
    %c0_i32_1 = arith.constant 0 : i32
    return %c0_i32, %c0_i32_0 : i32, i32
  }
  func.func @transform_1(%arg0: i32) -> (i32, i32, i32) {
    %c0_i32 = arith.constant 0 : i32
    %c0_i32_0 = arith.constant 0 : i32
    %c0_i32_1 = arith.constant 0 : i32
    %c0_i32_2 = arith.constant 0 : i32
    return %c0_i32, %c0_i32_0, %c0_i32_1 : i32, i32, i32
  }
  func.func @transform_2(%arg0: i32) -> (i32, i32, i32) {
    %c0_i32 = arith.constant 0 : i32
    %c0_i32_0 = arith.constant 0 : i32
    %c0_i32_1 = arith.constant 0 : i32
    %c0_i32_2 = arith.constant 0 : i32
    return %c0_i32, %c0_i32_0, %c0_i32_1 : i32, i32, i32
  }
  func.func @transform_3(%arg0: i32) -> (i32, i32) {
    %c0_i32 = arith.constant 0 : i32
    %c0_i32_0 = arith.constant 0 : i32
    %c0_i32_1 = arith.constant 0 : i32
    return %c0_i32, %c0_i32_0 : i32, i32
  }
  func.func @transform_4(%arg0: i32) -> (i32, i32) {
    %c0_i32 = arith.constant 0 : i32
    %c0_i32_0 = arith.constant 0 : i32
    %c0_i32_1 = arith.constant 0 : i32
    return %c0_i32, %c0_i32_0 : i32, i32
  }
  func.func @transform_5(%arg0: i32) -> (i32, i32) {
    %c0_i32 = arith.constant 0 : i32
    %c0_i32_0 = arith.constant 0 : i32
    %c0_i32_1 = arith.constant 0 : i32
    return %c0_i32, %c0_i32_0 : i32, i32
  }
  func.func @transform_6(%arg0: i32) -> (i32, i32) {
    %c0_i32 = arith.constant 0 : i32
    %c0_i32_0 = arith.constant 0 : i32
    %c0_i32_1 = arith.constant 0 : i32
    return %c0_i32, %c0_i32_0 : i32, i32
  }
  func.func @transform_7(%arg0: i32) -> (i32, i32) {
    %c0_i32 = arith.constant 0 : i32
    %c0_i32_0 = arith.constant 0 : i32
    %c0_i32_1 = arith.constant 0 : i32
    return %c0_i32, %c0_i32_0 : i32, i32
  }
  func.func @transform_8(%arg0: i32) -> (i32, i32) {
    %c0_i32 = arith.constant 0 : i32
    %c0_i32_0 = arith.constant 0 : i32
    %c0_i32_1 = arith.constant 0 : i32
    return %c0_i32, %c0_i32_0 : i32, i32
  }
  func.func @transform_9(%arg0: i32) -> (i32, i32) {
    %c0_i32 = arith.constant 0 : i32
    %c0_i32_0 = arith.constant 0 : i32
    %c0_i32_1 = arith.constant 0 : i32
    return %c0_i32, %c0_i32_0 : i32, i32
  }
  func.func @transform_10(%arg0: i32) -> (i32, i32) {
    %c0_i32 = arith.constant 0 : i32
    %c0_i32_0 = arith.constant 0 : i32
    %c0_i32_1 = arith.constant 0 : i32
    return %c0_i32, %c0_i32_0 : i32, i32
  }
  func.func @transform_11(%arg0: i32) -> (i32, i32, i32) {
    %c0_i32 = arith.constant 0 : i32
    %c0_i32_0 = arith.constant 0 : i32
    %c0_i32_1 = arith.constant 0 : i32
    %c0_i32_2 = arith.constant 0 : i32
    return %c0_i32, %c0_i32_0, %c0_i32_1 : i32, i32, i32
  }
  func.func @transform_12(%arg0: i32) -> (i32, i32, i32) {
    %c0_i32 = arith.constant 0 : i32
    %c0_i32_0 = arith.constant 0 : i32
    %c0_i32_1 = arith.constant 0 : i32
    %c0_i32_2 = arith.constant 0 : i32
    return %c0_i32, %c0_i32_0, %c0_i32_1 : i32, i32, i32
  }
}

</mosaic_0001>

<llo_original>
// kernel: lstm_predictor_forward.1
$region0: #{lstm_predictor_forward.1}
  #allocation0 [shape = 'u32[]', space=smem, size = 0x4, offset = 0x4, fixed_abs, tag = 'smem constant byte address 0x4 - core index']
  #allocation1 [shape = 'u32[72,128]{1,0:T(1,128)}', space=vmem, size = 0x9000, scoped, tag = 'internal scratch']
  %s0 = inlined_call_operand.vmem [shape: f32[16,4], index: 0, kind: input, shape index: {}]
  %s1 = inlined_call_operand.hbm [shape: f32[2,2,32], index: 1, kind: input, shape index: {}, may-alias: {1,11}]
  %s2 = inlined_call_operand.hbm [shape: f32[2,2,32], index: 2, kind: input, shape index: {}, may-alias: {2,12}]
  %s3 = inlined_call_operand.vmem [shape: bf16[4,16], index: 3, kind: input, shape index: {}]
  %s4 = inlined_call_operand.vmem [shape: f32[1,16], index: 4, kind: input, shape index: {}]
  %s5 = inlined_call_operand.vmem [shape: bf16[32,2], index: 5, kind: input, shape index: {}]
  %s6 = inlined_call_operand.vmem [shape: f32[1,2], index: 6, kind: input, shape index: {}]
  %s7 = inlined_call_operand.vmem [shape: bf16[16,512], index: 7, kind: input, shape index: {}]
  %s8 = inlined_call_operand.vmem [shape: f32[1,512], index: 8, kind: input, shape index: {}]
  %s9 = inlined_call_operand.hbm [shape: bf16[64,512], index: 9, kind: input, shape index: {}]
  %s10 = inlined_call_operand.hbm [shape: f32[2,2], index: 10, kind: output, shape index: {0}]
  %s11 = inlined_call_operand.hbm [shape: f32[2,2,32], index: 11, kind: output, shape index: {1}, may-alias: {1,11}]
  %s12 = inlined_call_operand.hbm [shape: f32[2,2,32], index: 12, kind: output, shape index: {2}, may-alias: {2,12}]
  %13 = xla_tuple %s10, %s11, %s12
  %s14 = sld [smem:[#allocation0]]
  $region78: #{lstm_predictor_forward.1} parent=0
    _
  %s16 = ssub.s32 1, %s14
  %s17 = scalar_select 0, %s16, %s14
  $region1: #{lstm_predictor_forward.1} parent=0
    #allocation2 [shape = 'u8[2048]{0}', space=vmem, size = 0x800, scoped, tag = 'input window, operand 1, single buffered']
    #allocation3 [shape = 's32[1]{0}', space=sflag, size = 0x4, scoped, tag = 'scoped memory for lstm_predictor_forward.1']
    #allocation4 [shape = 's32[1]{0}', space=sflag, size = 0x4, scoped, tag = 'scoped memory for lstm_predictor_forward.1']
    #allocation5 [shape = 'u8[2048]{0}', space=vmem, size = 0x800, scoped, tag = 'input window, operand 2, single buffered']
    #allocation6 [shape = 's32[1]{0}', space=sflag, size = 0x4, scoped, tag = 'scoped memory for lstm_predictor_forward.1']
    #allocation7 [shape = 'u8[65536]{0}', space=vmem, size = 0x10000, scoped, tag = 'input window, operand 9, single buffered']
    #allocation8 [shape = 'u8[1024]{0}', space=vmem, size = 0x400, scoped, tag = 'output window, operand 0, single buffered']
    #allocation9 [shape = 'u8[2048]{0}', space=vmem, size = 0x800, scoped, tag = 'output window, operand 1, single buffered']
    #allocation10 [shape = 's32[1]{0}', space=sflag, size = 0x4, scoped, tag = 'scoped memory for lstm_predictor_forward.1']
    #allocation11 [shape = 'u8[2048]{0}', space=vmem, size = 0x800, scoped, tag = 'output window, operand 2, single buffered']
    %18 = vsyncpa [#allocation3], 0
    %19 = vsyncpa [#allocation6], 0
    %20 = vsyncpa [#allocation4], 0
    %21 = vsyncpa [#allocation10], 0
    // Predicated region
    $region2: #{lstm_predictor_forward.1} parent=1 // pred_check
      _
    $region3: #{lstm_predictor_forward.1} parent=1 // pred_check_branch
      %23 = sbr.rel (0) target = $region5
    $region4: #{lstm_predictor_forward.1} parent=1 // pred_region
      _
    $region5: #{lstm_predictor_forward.1} parent=1 // pred_fallthru
      _
    // Predicated region
    $region6: #{lstm_predictor_forward.1} parent=1 // pred_check
      _
    $region7: #{lstm_predictor_forward.1} parent=1 // pred_check_branch
      %25 = sbr.rel (0) target = $region9
    $region8: #{lstm_predictor_forward.1} parent=1 // pred_region
      %27 = vsyncadd [#allocation3], 0
      %s28 = sshll.u32 %s1, 4
      %s29 = int_to_ptr.hbm [resolvable:$true] %s28
      %s30 = sshll.u32 [#allocation2], 4
      %s31 = int_to_ptr.vmem [resolvable:$true] %s30
      %36 = dma.hbm_to_vmem [thread:$0]  %s29, 64, %s31, [#allocation3], 32, 32, 2
    $region9: #{lstm_predictor_forward.1} parent=1 // pred_fallthru
      _
    // Predicated region
    $region10: #{lstm_predictor_forward.1} parent=1 // pred_check
      _
    $region11: #{lstm_predictor_forward.1} parent=1 // pred_check_branch
      %38 = sbr.rel (0) target = $region13
    $region12: #{lstm_predictor_forward.1} parent=1 // pred_region
      %40 = vsyncadd [#allocation6], 0
      %s41 = sshll.u32 %s2, 4
      %s42 = int_to_ptr.hbm [resolvable:$true] %s41
      %s43 = sshll.u32 [#allocation5], 4
      %s44 = int_to_ptr.vmem [resolvable:$true] %s43
      %49 = dma.hbm_to_vmem [thread:$0]  %s42, 64, %s44, [#allocation6], 32, 32, 2
    $region13: #{lstm_predictor_forward.1} parent=1 // pred_fallthru
      _
    // Predicated region
    $region14: #{lstm_predictor_forward.1} parent=1 // pred_check
      _
    $region15: #{lstm_predictor_forward.1} parent=1 // pred_check_branch
      %51 = sbr.rel (0) target = $region17
    $region16: #{lstm_predictor_forward.1} parent=1 // pred_region
      _
    $region17: #{lstm_predictor_forward.1} parent=1 // pred_fallthru
      _
    // Predicated region
    $region18: #{lstm_predictor_forward.1} parent=1 // pred_check
      _
    $region19: #{lstm_predictor_forward.1} parent=1 // pred_check_branch
      %53 = sbr.rel (0) target = $region21
    $region20: #{lstm_predictor_forward.1} parent=1 // pred_region
      _
    $region21: #{lstm_predictor_forward.1} parent=1 // pred_fallthru
      _
    // Predicated region
    $region22: #{lstm_predictor_forward.1} parent=1 // pred_check
      _
    $region23: #{lstm_predictor_forward.1} parent=1 // pred_check_branch
      %55 = sbr.rel (0) target = $region25
    $region24: #{lstm_predictor_forward.1} parent=1 // pred_region
      _
    $region25: #{lstm_predictor_forward.1} parent=1 // pred_fallthru
      _
    // Predicated region
    $region26: #{lstm_predictor_forward.1} parent=1 // pred_check
      _
    $region27: #{lstm_predictor_forward.1} parent=1 // pred_check_branch
      %57 = sbr.rel (0) target = $region29
    $region28: #{lstm_predictor_forward.1} parent=1 // pred_region
      _
    $region29: #{lstm_predictor_forward.1} parent=1 // pred_fallthru
      _
    // Predicated region
    $region30: #{lstm_predictor_forward.1} parent=1 // pred_check
      _
    $region31: #{lstm_predictor_forward.1} parent=1 // pred_check_branch
      %59 = sbr.rel (0) target = $region33
    $region32: #{lstm_predictor_forward.1} parent=1 // pred_region
      _
    $region33: #{lstm_predictor_forward.1} parent=1 // pred_fallthru
      _
    // Predicated region
    $region34: #{lstm_predictor_forward.1} parent=1 // pred_check
      _
    $region35: #{lstm_predictor_forward.1} parent=1 // pred_check_branch
      %61 = sbr.rel (0) target = $region37
    $region36: #{lstm_predictor_forward.1} parent=1 // pred_region
      _
    $region37: #{lstm_predictor_forward.1} parent=1 // pred_fallthru
      _
    // Predicated region
    $region38: #{lstm_predictor_forward.1} parent=1 // pred_check
      _
    $region39: #{lstm_predictor_forward.1} parent=1 // pred_check_branch
      %63 = sbr.rel (0) target = $region41
    $region40: #{lstm_predictor_forward.1} parent=1 // pred_region
      %65 = vsyncadd [#allocation6], 0
      %s66 = sshll.u32 %s9, 4
      %s67 = int_to_ptr.hbm [resolvable:$true] %s66
      %s68 = sshll.u32 [#allocation7], 4
      %s69 = int_to_ptr.vmem [resolvable:$true] %s68
      %74 = dma.hbm_to_vmem [thread:$0]  %s67, 2048, %s69, [#allocation6], 256, 256, 16
    $region41: #{lstm_predictor_forward.1} parent=1 // pred_fallthru
      _
    // Predicated region
    $region42: #{lstm_predictor_forward.1} parent=1 // pred_check
      _
    $region43: #{lstm_predictor_forward.1} parent=1 // pred_check_branch
      %76 = sbr.rel (0) target = $region45
    $region44: #{lstm_predictor_forward.1} parent=1 // pred_region
      %78 = dma.done [#allocation3], 64
    $region45: #{lstm_predictor_forward.1} parent=1 // pred_fallthru
      _
    // Predicated region
    $region46: #{lstm_predictor_forward.1} parent=1 // pred_check
      _
    $region47: #{lstm_predictor_forward.1} parent=1 // pred_check_branch
      %80 = sbr.rel (0) target = $region49
    $region48: #{lstm_predictor_forward.1} parent=1 // pred_region
      %82 = dma.done [#allocation6], 64
    $region49: #{lstm_predictor_forward.1} parent=1 // pred_fallthru
      _
    // Predicated region
    $region50: #{lstm_predictor_forward.1} parent=1 // pred_check
      _
    $region51: #{lstm_predictor_forward.1} parent=1 // pred_check_branch
      %84 = sbr.rel (0) target = $region53
    $region52: #{lstm_predictor_forward.1} parent=1 // pred_region
      %86 = dma.done [#allocation6], 2048
    $region53: #{lstm_predictor_forward.1} parent=1 // pred_fallthru
      _
    %v88 = vld [vmem:[%s0] sm:$0xff]
    %v89 = vld [vmem:[%s0 + $0x8] sm:$0xff]
    %v90 = vpack.c.bf16 %v89, %v88
    %v91 = vld [vmem:[%s3] sm:$0x3]
    %v92 = vld [vmem:[%s4] sm:$0x1]
    %v94 = vperm.slane %v92, 0
    %vm96 = vcmask 31744
    %v98 = vsel %vm96, %v90, 0
    %vm100 = vcmask 1041408
    %v102 = vsel %vm100, %v91, 0
    %104 = vmatpush.bf16.msra.mxu0 0
    %105 = vmatpush.bf16.msra.mxu0 0
    %106 = vmatpush.bf16.msra.mxu0 0
    %107 = vmatpush.bf16.msra.mxu0 0
    %108 = vmatpush.bf16.msra.mxu0 0
    %109 = vmatpush.bf16.msra.mxu0 0
    %110 = vmatpush.bf16.msra.mxu0 0
    %111 = vmatpush.bf16.msra.mxu0 %v102
    %112 = vmatmul.bf16.gmra.mxu0 %v98
    %v113 = vpop.f32.mrf.mxu0
    %v114 = vadd.f32 %v94, %v113
    %v115 = vpop.f32.mrf.mxu0
    %v116 = vadd.f32 %v94, %v115
    %117 = vdwg.mxu0
    %v118 = vmax.f32 %v114, 0.0
    %v119 = vmax.f32 %v116, 0.0
    %v120 = vpack.c.bf16 %v119, %v118
    %v121 = vld [vmem:[%s7] sm:$0xff]
    %v122 = vld [vmem:[%s7 + $0x8] sm:$0xff]
    %v123 = vld [vmem:[%s7 + $0x10] sm:$0xff]
    %v124 = vld [vmem:[%s7 + $0x18] sm:$0xff]
    %v125 = vld [vmem:[%s8] sm:$0xf]
    %v127 = vperm.slane %v125, 0
    %v128 = vperm.slane %v125, 1
    %v129 = vperm.slane %v125, 2
    %v130 = vperm.slane %v125, 3
    %v139 = vunpack.c.l.b16 %v121
    %v140 = vunpack.c.h.b16 %v121
    %v141 = vunpack.c.l.b16 %v122
    %v142 = vunpack.c.h.b16 %v122
    %v143 = vunpack.c.l.b16 %v123
    %v144 = vunpack.c.h.b16 %v123
    %v145 = vunpack.c.l.b16 %v124
    %v146 = vunpack.c.h.b16 %v124
    %v147 = vpack.c.b16 %v143, %v139
    %v148 = vpack.c.b16 %v144, %v140
    %v149 = vpack.c.b16 %v145, %v141
    %v150 = vpack.c.b16 %v146, %v142
    %vm155 = vcmask 130048
    %v157 = vsel %vm155, %v120, 0
    %159 = vmatpush.bf16.msra.mxu0 0
    %160 = vmatpush.bf16.msra.mxu0 0
    %161 = vmatpush.bf16.msra.mxu0 0
    %162 = vmatpush.bf16.msra.mxu0 0
    %163 = vmatpush.bf16.msra.mxu0 0
    %164 = vmatpush.bf16.msra.mxu0 0
    %165 = vmatpush.bf16.msra.mxu0 0
    %166 = vmatpush.bf16.msra.mxu0 %v147
    %167 = vmatmul.bf16.gmra.mxu0 %v157
    %v168 = vpop.f32.mrf.mxu0
    %v169 = vadd.f32 %v127, %v168
    %v170 = vpop.f32.mrf.mxu0
    %v171 = vadd.f32 %v127, %v170
    %172 = vdwg.mxu0
    %173 = vmatpush.bf16.msra.mxu0 0
    %174 = vmatpush.bf16.msra.mxu0 0
    %175 = vmatpush.bf16.msra.mxu0 0
    %176 = vmatpush.bf16.msra.mxu0 0
    %177 = vmatpush.bf16.msra.mxu0 0
    %178 = vmatpush.bf16.msra.mxu0 0
    %179 = vmatpush.bf16.msra.mxu0 0
    %180 = vmatpush.bf16.msra.mxu0 %v148
    %181 = vmatmul.bf16.gmra.mxu0 %v157
    %v182 = vpop.f32.mrf.mxu0
    %v183 = vadd.f32 %v128, %v182
    %v184 = vpop.f32.mrf.mxu0
    %v185 = vadd.f32 %v128, %v184
    %186 = vdwg.mxu0
    %187 = vmatpush.bf16.msra.mxu0 0
    %188 = vmatpush.bf16.msra.mxu0 0
    %189 = vmatpush.bf16.msra.mxu0 0
    %190 = vmatpush.bf16.msra.mxu0 0
    %191 = vmatpush.bf16.msra.mxu0 0
    %192 = vmatpush.bf16.msra.mxu0 0
    %193 = vmatpush.bf16.msra.mxu0 0
    %194 = vmatpush.bf16.msra.mxu0 %v149
    %195 = vmatmul.bf16.gmra.mxu0 %v157
    %v196 = vpop.f32.mrf.mxu0
    %v197 = vadd.f32 %v129, %v196
    %v198 = vpop.f32.mrf.mxu0
    %v199 = vadd.f32 %v129, %v198
    %200 = vdwg.mxu0
    %201 = vmatpush.bf16.msra.mxu0 0
    %202 = vmatpush.bf16.msra.mxu0 0
    %203 = vmatpush.bf16.msra.mxu0 0
    %204 = vmatpush.bf16.msra.mxu0 0
    %205 = vmatpush.bf16.msra.mxu0 0
    %206 = vmatpush.bf16.msra.mxu0 0
    %207 = vmatpush.bf16.msra.mxu0 0
    %208 = vmatpush.bf16.msra.mxu0 %v150
    %209 = vmatmul.bf16.gmra.mxu0 %v157
    %v210 = vpop.f32.mrf.mxu0
    %v211 = vadd.f32 %v130, %v210
    %v212 = vpop.f32.mrf.mxu0
    %v213 = vadd.f32 %v130, %v212
    %214 = vdwg.mxu0
    %v215 = vld [vmem:[#allocation2] sm:$0x3]
    %s216 = scalar_lea.vmem [#allocation2], 2
    %v217 = vld [vmem:[%s216] sm:$0x3]
    %219 = vrot.lane.b32.xlu0 %v217, 32
    %v220 = vpop.permute.xlu0 %219
    %vm222 = vcmask 261120
    %v223 = vsel %vm222, %v215, %v220
    %v224 = vld [vmem:[#allocation5] sm:$0x3]
    %s225 = scalar_lea.vmem [#allocation5], 2
    %v226 = vld [vmem:[%s225] sm:$0x3]
    %228 = vrot.lane.b32.xlu0 %v226, 32
    %v229 = vpop.permute.xlu0 %228
    %v231 = vsel %vm222, %v224, %v229
    %v232 = vlaneseq
    %v233 = vand.u32 %v232, 127
    %v234 = vld [vmem:[#allocation7] sm:$0xff]
    %v235 = vld [vmem:[#allocation7 + $0x8] sm:$0xff]
    %v236 = vld [vmem:[#allocation7 + $0x10] sm:$0xff]
    %v237 = vld [vmem:[#allocation7 + $0x18] sm:$0xff]
    %v238 = vld [vmem:[#allocation7 + $0x20] sm:$0xff]
    %v239 = vld [vmem:[#allocation7 + $0x28] sm:$0xff]
    %v240 = vld [vmem:[#allocation7 + $0x30] sm:$0xff]
    %v241 = vld [vmem:[#allocation7 + $0x38] sm:$0xff]
    %v242 = vld [vmem:[#allocation7 + $0x40] sm:$0xff]
    %v243 = vld [vmem:[#allocation7 + $0x48] sm:$0xff]
    %v244 = vld [vmem:[#allocation7 + $0x50] sm:$0xff]
    %v245 = vld [vmem:[#allocation7 + $0x58] sm:$0xff]
    %v246 = vld [vmem:[#allocation7 + $0x60] sm:$0xff]
    %v247 = vld [vmem:[#allocation7 + $0x68] sm:$0xff]
    %v248 = vld [vmem:[#allocation7 + $0x70] sm:$0xff]
    %v249 = vld [vmem:[#allocation7 + $0x78] sm:$0xff]
    %v250 = vpack.c.bf16 %v223, %v223
    %v267 = vunpack.c.l.b16 %v234
    %v268 = vunpack.c.h.b16 %v234
    %v269 = vunpack.c.l.b16 %v235
    %v270 = vunpack.c.h.b16 %v235
    %v271 = vunpack.c.l.b16 %v236
    %v272 = vunpack.c.h.b16 %v236
    %v273 = vunpack.c.l.b16 %v237
    %v274 = vunpack.c.h.b16 %v237
    %v275 = vunpack.c.l.b16 %v238
    %v276 = vunpack.c.h.b16 %v238
    %v277 = vunpack.c.l.b16 %v239
    %v278 = vunpack.c.h.b16 %v239
    %v279 = vunpack.c.l.b16 %v240
    %v280 = vunpack.c.h.b16 %v240
    %v281 = vunpack.c.l.b16 %v241
    %v282 = vunpack.c.h.b16 %v241
    %v283 = vunpack.c.l.b16 %v242
    %v284 = vunpack.c.h.b16 %v242
    %v285 = vunpack.c.l.b16 %v243
    %v286 = vunpack.c.h.b16 %v243
    %v287 = vunpack.c.l.b16 %v244
    %v288 = vunpack.c.h.b16 %v244
    %v289 = vunpack.c.l.b16 %v245
    %v290 = vunpack.c.h.b16 %v245
    %v291 = vunpack.c.l.b16 %v246
    %v292 = vunpack.c.h.b16 %v246
    %v293 = vunpack.c.l.b16 %v247
    %v294 = vunpack.c.h.b16 %v247
    %v295 = vunpack.c.l.b16 %v248
    %v296 = vunpack.c.h.b16 %v248
    %v297 = vunpack.c.l.b16 %v249
    %v298 = vunpack.c.h.b16 %v249
    %v299 = vpack.c.b16 %v271, %v267
    %v300 = vpack.c.b16 %v272, %v268
    %v301 = vpack.c.b16 %v273, %v269
    %v302 = vpack.c.b16 %v274, %v270
    %v303 = vpack.c.b16 %v279, %v275
    %v304 = vpack.c.b16 %v280, %v276
    %v305 = vpack.c.b16 %v281, %v277
    %v306 = vpack.c.b16 %v282, %v278
    %v307 = vpack.c.b16 %v287, %v283
    %v308 = vpack.c.b16 %v288, %v284
    %v309 = vpack.c.b16 %v289, %v285
    %v310 = vpack.c.b16 %v290, %v286
    %v311 = vpack.c.b16 %v295, %v291
    %v312 = vpack.c.b16 %v296, %v292
    %v313 = vpack.c.b16 %v297, %v293
    %v314 = vpack.c.b16 %v298, %v294
    %vm331 = vcmask 523264
    %v333 = vsel %vm331, %v250, 0
    %335 = vmatpush.bf16.msra.mxu0 0
    %336 = vmatpush.bf16.msra.mxu0 0
    %337 = vmatpush.bf16.msra.mxu0 0
    %338 = vmatpush.bf16.msra.mxu0 0
    %339 = vmatpush.bf16.msra.mxu0 %v311
    %340 = vmatpush.bf16.msra.mxu0 %v307
    %341 = vmatpush.bf16.msra.mxu0 %v303
    %342 = vmatpush.bf16.msra.mxu0 %v299
    %343 = vmatmul.bf16.gmra.mxu0 %v333
    %v344 = vpop.f32.mrf.mxu0
    %v345 = vadd.f32 0.0, %v344
    %v346 = vpop.f32.mrf.mxu0
    %347 = vdwg.mxu0
    %348 = vmatpush.bf16.msra.mxu0 0
    %349 = vmatpush.bf16.msra.mxu0 0
    %350 = vmatpush.bf16.msra.mxu0 0
    %351 = vmatpush.bf16.msra.mxu0 0
    %352 = vmatpush.bf16.msra.mxu0 %v312
    %353 = vmatpush.bf16.msra.mxu0 %v308
    %354 = vmatpush.bf16.msra.mxu0 %v304
    %355 = vmatpush.bf16.msra.mxu0 %v300
    %356 = vmatmul.bf16.gmra.mxu0 %v333
    %v357 = vpop.f32.mrf.mxu0
    %v358 = vadd.f32 0.0, %v357
    %v359 = vpop.f32.mrf.mxu0
    %360 = vdwg.mxu0
    %361 = vmatpush.bf16.msra.mxu0 0
    %362 = vmatpush.bf16.msra.mxu0 0
    %363 = vmatpush.bf16.msra.mxu0 0
    %364 = vmatpush.bf16.msra.mxu0 0
    %365 = vmatpush.bf16.msra.mxu0 %v313
    %366 = vmatpush.bf16.msra.mxu0 %v309
    %367 = vmatpush.bf16.msra.mxu0 %v305
    %368 = vmatpush.bf16.msra.mxu0 %v301
    %369 = vmatmul.bf16.gmra.mxu0 %v333
    %v370 = vpop.f32.mrf.mxu0
    %v371 = vadd.f32 0.0, %v370
    %v372 = vpop.f32.mrf.mxu0
    %373 = vdwg.mxu0
    %374 = vmatpush.bf16.msra.mxu0 0
    %375 = vmatpush.bf16.msra.mxu0 0
    %376 = vmatpush.bf16.msra.mxu0 0
    %377 = vmatpush.bf16.msra.mxu0 0
    %378 = vmatpush.bf16.msra.mxu0 %v314
    %379 = vmatpush.bf16.msra.mxu0 %v310
    %380 = vmatpush.bf16.msra.mxu0 %v306
    %381 = vmatpush.bf16.msra.mxu0 %v302
    %382 = vmatmul.bf16.gmra.mxu0 %v333
    %v383 = vpop.f32.mrf.mxu0
    %v384 = vadd.f32 0.0, %v383
    %v385 = vpop.f32.mrf.mxu0
    %386 = vdwg.mxu0
    %v387 = vadd.f32 %v169, %v345
    %v388 = vadd.f32 %v183, %v358
    %v389 = vadd.f32 %v197, %v371
    %v390 = vadd.f32 %v211, %v384
    %v391 = vxor.u32 %v387, 2147483648
    %v392 = vmul.f32 %v391, 1.442695
    %v393 = vpow.pop %v392
    %v394 = vadd.f32 %v393, 1.0
    %v395 = vrcp.pop %v394
    %v396 = vmul.f32 %v394, %v395
    %v397 = vsub.f32 1.0, %v396
    %v398 = vmul.f32 %v395, %v397
    %v399 = vadd.f32 %v395, %v398
    %vm400 = vweird.f32 %v394
    %vm401 = vweird.f32 %v395
    %vm402 = vmor %vm400, %vm401
    %v403 = vsel %vm402, %v395, %v399
    %v404 = vand.u32 2147483647, %v394
    %vm405 = vcmp.eq.f32.partialorder %v404, 8.507059e+37
    %v406 = vand.u32 %v394, 2147483648
    %v407 = vor.u32 1.1754944e-38, %v406
    %v408 = vsel %vm405, %v407, %v403
    %v409 = vmul.f32 1.0, %v408
    %v410 = vxor.u32 %v388, 2147483648
    %v411 = vmul.f32 %v410, 1.442695
    %v412 = vpow.pop %v411
    %v413 = vadd.f32 %v412, 1.0
    %v414 = vrcp.pop %v413
    %v415 = vmul.f32 %v413, %v414
    %v416 = vsub.f32 1.0, %v415
    %v417 = vmul.f32 %v414, %v416
    %v418 = vadd.f32 %v414, %v417
    %vm419 = vweird.f32 %v413
    %vm420 = vweird.f32 %v414
    %vm421 = vmor %vm419, %vm420
    %v422 = vsel %vm421, %v414, %v418
    %v423 = vand.u32 2147483647, %v413
    %vm424 = vcmp.eq.f32.partialorder %v423, 8.507059e+37
    %v425 = vand.u32 %v413, 2147483648
    %v426 = vor.u32 1.1754944e-38, %v425
    %v427 = vsel %vm424, %v426, %v422
    %v428 = vmul.f32 1.0, %v427
    %v429 = vtanh.pop %v389
    %v430 = vxor.u32 %v390, 2147483648
    %v431 = vmul.f32 %v430, 1.442695
    %v432 = vpow.pop %v431
    %v433 = vadd.f32 %v432, 1.0
    %v434 = vrcp.pop %v433
    %v435 = vmul.f32 %v433, %v434
    %v436 = vsub.f32 1.0, %v435
    %v437 = vmul.f32 %v434, %v436
    %v438 = vadd.f32 %v434, %v437
    %vm439 = vweird.f32 %v433
    %vm440 = vweird.f32 %v434
    %vm441 = vmor %vm439, %vm440
    %v442 = vsel %vm441, %v434, %v438
    %v443 = vand.u32 2147483647, %v433
    %vm444 = vcmp.eq.f32.partialorder %v443, 8.507059e+37
    %v445 = vand.u32 %v433, 2147483648
    %v446 = vor.u32 1.1754944e-38, %v445
    %v447 = vsel %vm444, %v446, %v442
    %v448 = vmul.f32 1.0, %v447
    %v449 = vmul.f32 %v428, %v231
    %v450 = vmul.f32 %v409, %v429
    %v451 = vadd.f32 %v449, %v450
    %v452 = vtanh.pop %v451
    %v453 = vmul.f32 %v448, %v452
    %vm454 = vcmp.ge.s32.totalorder %v233, 0
    %vm455 = vcmp.lt.s32.totalorder %v233, 32
    %vm456 = vmand %vm454, %vm455
    %v457 = vsel %vm456, %v451, %v231
    %v458 = vsel %vm456, %v453, %v223
    %v459 = vpack.c.bf16 %v458, %v458
    %v461 = vsel %vm331, %v459, 0
    %463 = vmatpush.bf16.msra.mxu0 0
    %464 = vmatpush.bf16.msra.mxu0 0
    %465 = vmatpush.bf16.msra.mxu0 0
    %466 = vmatpush.bf16.msra.mxu0 0
    %467 = vmatpush.bf16.msra.mxu0 %v311
    %468 = vmatpush.bf16.msra.mxu0 %v307
    %469 = vmatpush.bf16.msra.mxu0 %v303
    %470 = vmatpush.bf16.msra.mxu0 %v299
    %471 = vmatmul.bf16.gmra.mxu0 %v461
    %v472 = vpop.f32.mrf.mxu0
    %v473 = vadd.f32 0.0, %v472
    %v474 = vpop.f32.mrf.mxu0
    %475 = vdwg.mxu0
    %476 = vmatpush.bf16.msra.mxu0 0
    %477 = vmatpush.bf16.msra.mxu0 0
    %478 = vmatpush.bf16.msra.mxu0 0
    %479 = vmatpush.bf16.msra.mxu0 0
    %480 = vmatpush.bf16.msra.mxu0 %v312
    %481 = vmatpush.bf16.msra.mxu0 %v308
    %482 = vmatpush.bf16.msra.mxu0 %v304
    %483 = vmatpush.bf16.msra.mxu0 %v300
    %484 = vmatmul.bf16.gmra.mxu0 %v461
    %v485 = vpop.f32.mrf.mxu0
    %v486 = vadd.f32 0.0, %v485
    %v487 = vpop.f32.mrf.mxu0
    %488 = vdwg.mxu0
    %489 = vmatpush.bf16.msra.mxu0 0
    %490 = vmatpush.bf16.msra.mxu0 0
    %491 = vmatpush.bf16.msra.mxu0 0
    %492 = vmatpush.bf16.msra.mxu0 0
    %493 = vmatpush.bf16.msra.mxu0 %v313
    %494 = vmatpush.bf16.msra.mxu0 %v309
    %495 = vmatpush.bf16.msra.mxu0 %v305
    %496 = vmatpush.bf16.msra.mxu0 %v301
    %497 = vmatmul.bf16.gmra.mxu0 %v461
    %v498 = vpop.f32.mrf.mxu0
    %v499 = vadd.f32 0.0, %v498
    %v500 = vpop.f32.mrf.mxu0
    %501 = vdwg.mxu0
    %502 = vmatpush.bf16.msra.mxu0 0
    %503 = vmatpush.bf16.msra.mxu0 0
    %504 = vmatpush.bf16.msra.mxu0 0
    %505 = vmatpush.bf16.msra.mxu0 0
    %506 = vmatpush.bf16.msra.mxu0 %v314
    %507 = vmatpush.bf16.msra.mxu0 %v310
    %508 = vmatpush.bf16.msra.mxu0 %v306
    %509 = vmatpush.bf16.msra.mxu0 %v302
    %510 = vmatmul.bf16.gmra.mxu0 %v461
    %v511 = vpop.f32.mrf.mxu0
    %v512 = vadd.f32 0.0, %v511
    %v513 = vpop.f32.mrf.mxu0
    %514 = vdwg.mxu0
    %v519 = vrot.slane %v473, 6
    %v520 = vrot.slane %v486, 6
    %v521 = vrot.slane %v499, 6
    %v522 = vrot.slane %v512, 6
    %v527 = vadd.f32 %v169, %v519
    %v528 = vadd.f32 %v183, %v520
    %v529 = vadd.f32 %v197, %v521
    %v530 = vadd.f32 %v211, %v522
    %v531 = vxor.u32 %v527, 2147483648
    %v532 = vmul.f32 %v531, 1.442695
    %v533 = vpow.pop %v532
    %v534 = vadd.f32 %v533, 1.0
    %v535 = vrcp.pop %v534
    %v536 = vmul.f32 %v534, %v535
    %v537 = vsub.f32 1.0, %v536
    %v538 = vmul.f32 %v535, %v537
    %v539 = vadd.f32 %v535, %v538
    %vm540 = vweird.f32 %v534
    %vm541 = vweird.f32 %v535
    %vm542 = vmor %vm540, %vm541
    %v543 = vsel %vm542, %v535, %v539
    %v544 = vand.u32 2147483647, %v534
    %vm545 = vcmp.eq.f32.partialorder %v544, 8.507059e+37
    %v546 = vand.u32 %v534, 2147483648
    %v547 = vor.u32 1.1754944e-38, %v546
    %v548 = vsel %vm545, %v547, %v543
    %v549 = vmul.f32 1.0, %v548
    %v550 = vxor.u32 %v528, 2147483648
    %v551 = vmul.f32 %v550, 1.442695
    %v552 = vpow.pop %v551
    %v553 = vadd.f32 %v552, 1.0
    %v554 = vrcp.pop %v553
    %v555 = vmul.f32 %v553, %v554
    %v556 = vsub.f32 1.0, %v555
    %v557 = vmul.f32 %v554, %v556
    %v558 = vadd.f32 %v554, %v557
    %vm559 = vweird.f32 %v553
    %vm560 = vweird.f32 %v554
    %vm561 = vmor %vm559, %vm560
    %v562 = vsel %vm561, %v554, %v558
    %v563 = vand.u32 2147483647, %v553
    %vm564 = vcmp.eq.f32.partialorder %v563, 8.507059e+37
    %v565 = vand.u32 %v553, 2147483648
    %v566 = vor.u32 1.1754944e-38, %v565
    %v567 = vsel %vm564, %v566, %v562
    %v568 = vmul.f32 1.0, %v567
    %v569 = vtanh.pop %v529
    %v570 = vxor.u32 %v530, 2147483648
    %v571 = vmul.f32 %v570, 1.442695
    %v572 = vpow.pop %v571
    %v573 = vadd.f32 %v572, 1.0
    %v574 = vrcp.pop %v573
    %v575 = vmul.f32 %v573, %v574
    %v576 = vsub.f32 1.0, %v575
    %v577 = vmul.f32 %v574, %v576
    %v578 = vadd.f32 %v574, %v577
    %vm579 = vweird.f32 %v573
    %vm580 = vweird.f32 %v574
    %vm581 = vmor %vm579, %vm580
    %v582 = vsel %vm581, %v574, %v578
    %v583 = vand.u32 2147483647, %v573
    %vm584 = vcmp.eq.f32.partialorder %v583, 8.507059e+37
    %v585 = vand.u32 %v573, 2147483648
    %v586 = vor.u32 1.1754944e-38, %v585
    %v587 = vsel %vm584, %v586, %v582
    %v588 = vmul.f32 1.0, %v587
    %v590 = vrot.slane %v457, 6
    %v592 = vmul.f32 %v568, %v590
    %v593 = vmul.f32 %v549, %v569
    %v594 = vadd.f32 %v592, %v593
    %v595 = vtanh.pop %v594
    %v596 = vmul.f32 %v588, %v595
    %v597 = vpack.c.bf16 %v596, %v596
    %v599 = vrot.slane %v597, 1
    %v601 = vsel %vm331, %v599, 0
    %603 = vmatpush.bf16.msra.mxu0 0
    %604 = vmatpush.bf16.msra.mxu0 0
    %605 = vmatpush.bf16.msra.mxu0 0
    %606 = vmatpush.bf16.msra.mxu0 0
    %607 = vmatpush.bf16.msra.mxu0 %v311
    %608 = vmatpush.bf16.msra.mxu0 %v307
    %609 = vmatpush.bf16.msra.mxu0 %v303
    %610 = vmatpush.bf16.msra.mxu0 %v299
    %611 = vmatmul.bf16.gmra.mxu0 %v601
    %v612 = vpop.f32.mrf.mxu0
    %v613 = vadd.f32 0.0, %v612
    %v614 = vpop.f32.mrf.mxu0
    %615 = vdwg.mxu0
    %616 = vmatpush.bf16.msra.mxu0 0
    %617 = vmatpush.bf16.msra.mxu0 0
    %618 = vmatpush.bf16.msra.mxu0 0
    %619 = vmatpush.bf16.msra.mxu0 0
    %620 = vmatpush.bf16.msra.mxu0 %v312
    %621 = vmatpush.bf16.msra.mxu0 %v308
    %622 = vmatpush.bf16.msra.mxu0 %v304
    %623 = vmatpush.bf16.msra.mxu0 %v300
    %624 = vmatmul.bf16.gmra.mxu0 %v601
    %v625 = vpop.f32.mrf.mxu0
    %v626 = vadd.f32 0.0, %v625
    %v627 = vpop.f32.mrf.mxu0
    %628 = vdwg.mxu0
    %629 = vmatpush.bf16.msra.mxu0 0
    %630 = vmatpush.bf16.msra.mxu0 0
    %631 = vmatpush.bf16.msra.mxu0 0
    %632 = vmatpush.bf16.msra.mxu0 0
    %633 = vmatpush.bf16.msra.mxu0 %v313
    %634 = vmatpush.bf16.msra.mxu0 %v309
    %635 = vmatpush.bf16.msra.mxu0 %v305
    %636 = vmatpush.bf16.msra.mxu0 %v301
    %637 = vmatmul.bf16.gmra.mxu0 %v601
    %v638 = vpop.f32.mrf.mxu0
    %v639 = vadd.f32 0.0, %v638
    %v640 = vpop.f32.mrf.mxu0
    %641 = vdwg.mxu0
    %642 = vmatpush.bf16.msra.mxu0 0
    %643 = vmatpush.bf16.msra.mxu0 0
    %644 = vmatpush.bf16.msra.mxu0 0
    %645 = vmatpush.bf16.msra.mxu0 0
    %646 = vmatpush.bf16.msra.mxu0 %v314
    %647 = vmatpush.bf16.msra.mxu0 %v310
    %648 = vmatpush.bf16.msra.mxu0 %v306
    %649 = vmatpush.bf16.msra.mxu0 %v302
    %650 = vmatmul.bf16.gmra.mxu0 %v601
    %v651 = vpop.f32.mrf.mxu0
    %v652 = vadd.f32 0.0, %v651
    %v653 = vpop.f32.mrf.mxu0
    %654 = vdwg.mxu0
    %v659 = vrot.slane %v613, 4
    %v660 = vrot.slane %v626, 4
    %v661 = vrot.slane %v639, 4
    %v662 = vrot.slane %v652, 4
    %v667 = vadd.f32 %v169, %v659
    %v668 = vadd.f32 %v183, %v660
    %v669 = vadd.f32 %v197, %v661
    %v670 = vadd.f32 %v211, %v662
    %v671 = vxor.u32 %v667, 2147483648
    %v672 = vmul.f32 %v671, 1.442695
    %v673 = vpow.pop %v672
    %v674 = vadd.f32 %v673, 1.0
    %v675 = vrcp.pop %v674
    %v676 = vmul.f32 %v674, %v675
    %v677 = vsub.f32 1.0, %v676
    %v678 = vmul.f32 %v675, %v677
    %v679 = vadd.f32 %v675, %v678
    %vm680 = vweird.f32 %v674
    %vm681 = vweird.f32 %v675
    %vm682 = vmor %vm680, %vm681
    %v683 = vsel %vm682, %v675, %v679
    %v684 = vand.u32 2147483647, %v674
    %vm685 = vcmp.eq.f32.partialorder %v684, 8.507059e+37
    %v686 = vand.u32 %v674, 2147483648
    %v687 = vor.u32 1.1754944e-38, %v686
    %v688 = vsel %vm685, %v687, %v683
    %v689 = vmul.f32 1.0, %v688
    %v690 = vxor.u32 %v668, 2147483648
    %v691 = vmul.f32 %v690, 1.442695
    %v692 = vpow.pop %v691
    %v693 = vadd.f32 %v692, 1.0
    %v694 = vrcp.pop %v693
    %v695 = vmul.f32 %v693, %v694
    %v696 = vsub.f32 1.0, %v695
    %v697 = vmul.f32 %v694, %v696
    %v698 = vadd.f32 %v694, %v697
    %vm699 = vweird.f32 %v693
    %vm700 = vweird.f32 %v694
    %vm701 = vmor %vm699, %vm700
    %v702 = vsel %vm701, %v694, %v698
    %v703 = vand.u32 2147483647, %v693
    %vm704 = vcmp.eq.f32.partialorder %v703, 8.507059e+37
    %v705 = vand.u32 %v693, 2147483648
    %v706 = vor.u32 1.1754944e-38, %v705
    %v707 = vsel %vm704, %v706, %v702
    %v708 = vmul.f32 1.0, %v707
    %v709 = vtanh.pop %v669
    %v710 = vxor.u32 %v670, 2147483648
    %v711 = vmul.f32 %v710, 1.442695
    %v712 = vpow.pop %v711
    %v713 = vadd.f32 %v712, 1.0
    %v714 = vrcp.pop %v713
    %v715 = vmul.f32 %v713, %v714
    %v716 = vsub.f32 1.0, %v715
    %v717 = vmul.f32 %v714, %v716
    %v718 = vadd.f32 %v714, %v717
    %vm719 = vweird.f32 %v713
    %vm720 = vweird.f32 %v714
    %vm721 = vmor %vm719, %vm720
    %v722 = vsel %vm721, %v714, %v718
    %v723 = vand.u32 2147483647, %v713
    %vm724 = vcmp.eq.f32.partialorder %v723, 8.507059e+37
    %v725 = vand.u32 %v713, 2147483648
    %v726 = vor.u32 1.1754944e-38, %v725
    %v727 = vsel %vm724, %v726, %v722
    %v728 = vmul.f32 1.0, %v727
    %v730 = vrot.slane %v594, 6
    %v732 = vmul.f32 %v708, %v730
    %v733 = vmul.f32 %v689, %v709
    %v734 = vadd.f32 %v732, %v733
    %v735 = vtanh.pop %v734
    %v736 = vmul.f32 %v728, %v735
    %v737 = vpack.c.bf16 %v736, %v736
    %v739 = vrot.slane %v737, 2
    %v741 = vsel %vm331, %v739, 0
    %743 = vmatpush.bf16.msra.mxu0 0
    %744 = vmatpush.bf16.msra.mxu0 0
    %745 = vmatpush.bf16.msra.mxu0 0
    %746 = vmatpush.bf16.msra.mxu0 0
    %747 = vmatpush.bf16.msra.mxu0 %v311
    %748 = vmatpush.bf16.msra.mxu0 %v307
    %749 = vmatpush.bf16.msra.mxu0 %v303
    %750 = vmatpush.bf16.msra.mxu0 %v299
    %751 = vmatmul.bf16.gmra.mxu0 %v741
    %v752 = vpop.f32.mrf.mxu0
    %v753 = vadd.f32 0.0, %v752
    %v754 = vpop.f32.mrf.mxu0
    %755 = vdwg.mxu0
    %756 = vmatpush.bf16.msra.mxu0 0
    %757 = vmatpush.bf16.msra.mxu0 0
    %758 = vmatpush.bf16.msra.mxu0 0
    %759 = vmatpush.bf16.msra.mxu0 0
    %760 = vmatpush.bf16.msra.mxu0 %v312
    %761 = vmatpush.bf16.msra.mxu0 %v308
    %762 = vmatpush.bf16.msra.mxu0 %v304
    %763 = vmatpush.bf16.msra.mxu0 %v300
    %764 = vmatmul.bf16.gmra.mxu0 %v741
    %v765 = vpop.f32.mrf.mxu0
    %v766 = vadd.f32 0.0, %v765
    %v767 = vpop.f32.mrf.mxu0
    %768 = vdwg.mxu0
    %769 = vmatpush.bf16.msra.mxu0 0
    %770 = vmatpush.bf16.msra.mxu0 0
    %771 = vmatpush.bf16.msra.mxu0 0
    %772 = vmatpush.bf16.msra.mxu0 0
    %773 = vmatpush.bf16.msra.mxu0 %v313
    %774 = vmatpush.bf16.msra.mxu0 %v309
    %775 = vmatpush.bf16.msra.mxu0 %v305
    %776 = vmatpush.bf16.msra.mxu0 %v301
    %777 = vmatmul.bf16.gmra.mxu0 %v741
    %v778 = vpop.f32.mrf.mxu0
    %v779 = vadd.f32 0.0, %v778
    %v780 = vpop.f32.mrf.mxu0
    %781 = vdwg.mxu0
    %782 = vmatpush.bf16.msra.mxu0 0
    %783 = vmatpush.bf16.msra.mxu0 0
    %784 = vmatpush.bf16.msra.mxu0 0
    %785 = vmatpush.bf16.msra.mxu0 0
    %786 = vmatpush.bf16.msra.mxu0 %v314
    %787 = vmatpush.bf16.msra.mxu0 %v310
    %788 = vmatpush.bf16.msra.mxu0 %v306
    %789 = vmatpush.bf16.msra.mxu0 %v302
    %790 = vmatmul.bf16.gmra.mxu0 %v741
    %v791 = vpop.f32.mrf.mxu0
    %v792 = vadd.f32 0.0, %v791
    %v793 = vpop.f32.mrf.mxu0
    %794 = vdwg.mxu0
    %v799 = vrot.slane %v753, 2
    %v800 = vrot.slane %v766, 2
    %v801 = vrot.slane %v779, 2
    %v802 = vrot.slane %v792, 2
    %v807 = vadd.f32 %v169, %v799
    %v808 = vadd.f32 %v183, %v800
    %v809 = vadd.f32 %v197, %v801
    %v810 = vadd.f32 %v211, %v802
    %v811 = vxor.u32 %v807, 2147483648
    %v812 = vmul.f32 %v811, 1.442695
    %v813 = vpow.pop %v812
    %v814 = vadd.f32 %v813, 1.0
    %v815 = vrcp.pop %v814
    %v816 = vmul.f32 %v814, %v815
    %v817 = vsub.f32 1.0, %v816
    %v818 = vmul.f32 %v815, %v817
    %v819 = vadd.f32 %v815, %v818
    %vm820 = vweird.f32 %v814
    %vm821 = vweird.f32 %v815
    %vm822 = vmor %vm820, %vm821
    %v823 = vsel %vm822, %v815, %v819
    %v824 = vand.u32 2147483647, %v814
    %vm825 = vcmp.eq.f32.partialorder %v824, 8.507059e+37
    %v826 = vand.u32 %v814, 2147483648
    %v827 = vor.u32 1.1754944e-38, %v826
    %v828 = vsel %vm825, %v827, %v823
    %v829 = vmul.f32 1.0, %v828
    %v830 = vxor.u32 %v808, 2147483648
    %v831 = vmul.f32 %v830, 1.442695
    %v832 = vpow.pop %v831
    %v833 = vadd.f32 %v832, 1.0
    %v834 = vrcp.pop %v833
    %v835 = vmul.f32 %v833, %v834
    %v836 = vsub.f32 1.0, %v835
    %v837 = vmul.f32 %v834, %v836
    %v838 = vadd.f32 %v834, %v837
    %vm839 = vweird.f32 %v833
    %vm840 = vweird.f32 %v834
    %vm841 = vmor %vm839, %vm840
    %v842 = vsel %vm841, %v834, %v838
    %v843 = vand.u32 2147483647, %v833
    %vm844 = vcmp.eq.f32.partialorder %v843, 8.507059e+37
    %v845 = vand.u32 %v833, 2147483648
    %v846 = vor.u32 1.1754944e-38, %v845
    %v847 = vsel %vm844, %v846, %v842
    %v848 = vmul.f32 1.0, %v847
    %v849 = vtanh.pop %v809
    %v850 = vxor.u32 %v810, 2147483648
    %v851 = vmul.f32 %v850, 1.442695
    %v852 = vpow.pop %v851
    %v853 = vadd.f32 %v852, 1.0
    %v854 = vrcp.pop %v853
    %v855 = vmul.f32 %v853, %v854
    %v856 = vsub.f32 1.0, %v855
    %v857 = vmul.f32 %v854, %v856
    %v858 = vadd.f32 %v854, %v857
    %vm859 = vweird.f32 %v853
    %vm860 = vweird.f32 %v854
    %vm861 = vmor %vm859, %vm860
    %v862 = vsel %vm861, %v854, %v858
    %v863 = vand.u32 2147483647, %v853
    %vm864 = vcmp.eq.f32.partialorder %v863, 8.507059e+37
    %v865 = vand.u32 %v853, 2147483648
    %v866 = vor.u32 1.1754944e-38, %v865
    %v867 = vsel %vm864, %v866, %v862
    %v868 = vmul.f32 1.0, %v867
    %v870 = vrot.slane %v734, 6
    %v872 = vmul.f32 %v848, %v870
    %v873 = vmul.f32 %v829, %v849
    %v874 = vadd.f32 %v872, %v873
    %v875 = vtanh.pop %v874
    %v876 = vmul.f32 %v868, %v875
    %v877 = vpack.c.bf16 %v876, %v876
    %v879 = vrot.slane %v877, 3
    %v881 = vsel %vm331, %v879, 0
    %883 = vmatpush.bf16.msra.mxu0 0
    %884 = vmatpush.bf16.msra.mxu0 0
    %885 = vmatpush.bf16.msra.mxu0 0
    %886 = vmatpush.bf16.msra.mxu0 0
    %887 = vmatpush.bf16.msra.mxu0 %v311
    %888 = vmatpush.bf16.msra.mxu0 %v307
    %889 = vmatpush.bf16.msra.mxu0 %v303
    %890 = vmatpush.bf16.msra.mxu0 %v299
    %891 = vmatmul.bf16.gmra.mxu0 %v881
    %v892 = vpop.f32.mrf.mxu0
    %v893 = vadd.f32 0.0, %v892
    %v894 = vpop.f32.mrf.mxu0
    %895 = vdwg.mxu0
    %896 = vmatpush.bf16.msra.mxu0 0
    %897 = vmatpush.bf16.msra.mxu0 0
    %898 = vmatpush.bf16.msra.mxu0 0
    %899 = vmatpush.bf16.msra.mxu0 0
    %900 = vmatpush.bf16.msra.mxu0 %v312
    %901 = vmatpush.bf16.msra.mxu0 %v308
    %902 = vmatpush.bf16.msra.mxu0 %v304
    %903 = vmatpush.bf16.msra.mxu0 %v300
    %904 = vmatmul.bf16.gmra.mxu0 %v881
    %v905 = vpop.f32.mrf.mxu0
    %v906 = vadd.f32 0.0, %v905
    %v907 = vpop.f32.mrf.mxu0
    %908 = vdwg.mxu0
    %909 = vmatpush.bf16.msra.mxu0 0
    %910 = vmatpush.bf16.msra.mxu0 0
    %911 = vmatpush.bf16.msra.mxu0 0
    %912 = vmatpush.bf16.msra.mxu0 0
    %913 = vmatpush.bf16.msra.mxu0 %v313
    %914 = vmatpush.bf16.msra.mxu0 %v309
    %915 = vmatpush.bf16.msra.mxu0 %v305
    %916 = vmatpush.bf16.msra.mxu0 %v301
    %917 = vmatmul.bf16.gmra.mxu0 %v881
    %v918 = vpop.f32.mrf.mxu0
    %v919 = vadd.f32 0.0, %v918
    %v920 = vpop.f32.mrf.mxu0
    %921 = vdwg.mxu0
    %922 = vmatpush.bf16.msra.mxu0 0
    %923 = vmatpush.bf16.msra.mxu0 0
    %924 = vmatpush.bf16.msra.mxu0 0
    %925 = vmatpush.bf16.msra.mxu0 0
    %926 = vmatpush.bf16.msra.mxu0 %v314
    %927 = vmatpush.bf16.msra.mxu0 %v310
    %928 = vmatpush.bf16.msra.mxu0 %v306
    %929 = vmatpush.bf16.msra.mxu0 %v302
    %930 = vmatmul.bf16.gmra.mxu0 %v881
    %v931 = vpop.f32.mrf.mxu0
    %v932 = vadd.f32 0.0, %v931
    %v933 = vpop.f32.mrf.mxu0
    %934 = vdwg.mxu0
    %v935 = vadd.f32 %v171, %v893
    %v936 = vadd.f32 %v185, %v906
    %v937 = vadd.f32 %v199, %v919
    %v938 = vadd.f32 %v213, %v932
    %v939 = vxor.u32 %v935, 2147483648
    %v940 = vmul.f32 %v939, 1.442695
    %v941 = vpow.pop %v940
    %v942 = vadd.f32 %v941, 1.0
    %v943 = vrcp.pop %v942
    %v944 = vmul.f32 %v942, %v943
    %v945 = vsub.f32 1.0, %v944
    %v946 = vmul.f32 %v943, %v945
    %v947 = vadd.f32 %v943, %v946
    %vm948 = vweird.f32 %v942
    %vm949 = vweird.f32 %v943
    %vm950 = vmor %vm948, %vm949
    %v951 = vsel %vm950, %v943, %v947
    %v952 = vand.u32 2147483647, %v942
    %vm953 = vcmp.eq.f32.partialorder %v952, 8.507059e+37
    %v954 = vand.u32 %v942, 2147483648
    %v955 = vor.u32 1.1754944e-38, %v954
    %v956 = vsel %vm953, %v955, %v951
    %v957 = vmul.f32 1.0, %v956
    %v958 = vxor.u32 %v936, 2147483648
    %v959 = vmul.f32 %v958, 1.442695
    %v960 = vpow.pop %v959
    %v961 = vadd.f32 %v960, 1.0
    %v962 = vrcp.pop %v961
    %v963 = vmul.f32 %v961, %v962
    %v964 = vsub.f32 1.0, %v963
    %v965 = vmul.f32 %v962, %v964
    %v966 = vadd.f32 %v962, %v965
    %vm967 = vweird.f32 %v961
    %vm968 = vweird.f32 %v962
    %vm969 = vmor %vm967, %vm968
    %v970 = vsel %vm969, %v962, %v966
    %v971 = vand.u32 2147483647, %v961
    %vm972 = vcmp.eq.f32.partialorder %v971, 8.507059e+37
    %v973 = vand.u32 %v961, 2147483648
    %v974 = vor.u32 1.1754944e-38, %v973
    %v975 = vsel %vm972, %v974, %v970
    %v976 = vmul.f32 1.0, %v975
    %v977 = vtanh.pop %v937
    %v978 = vxor.u32 %v938, 2147483648
    %v979 = vmul.f32 %v978, 1.442695
    %v980 = vpow.pop %v979
    %v981 = vadd.f32 %v980, 1.0
    %v982 = vrcp.pop %v981
    %v983 = vmul.f32 %v981, %v982
    %v984 = vsub.f32 1.0, %v983
    %v985 = vmul.f32 %v982, %v984
    %v986 = vadd.f32 %v982, %v985
    %vm987 = vweird.f32 %v981
    %vm988 = vweird.f32 %v982
    %vm989 = vmor %vm987, %vm988
    %v990 = vsel %vm989, %v982, %v986
    %v991 = vand.u32 2147483647, %v981
    %vm992 = vcmp.eq.f32.partialorder %v991, 8.507059e+37
    %v993 = vand.u32 %v981, 2147483648
    %v994 = vor.u32 1.1754944e-38, %v993
    %v995 = vsel %vm992, %v994, %v990
    %v996 = vmul.f32 1.0, %v995
    %v998 = vrot.slane %v874, 6
    %v1000 = vmul.f32 %v976, %v998
    %v1001 = vmul.f32 %v957, %v977
    %v1002 = vadd.f32 %v1000, %v1001
    %v1003 = vtanh.pop %v1002
    %v1004 = vmul.f32 %v996, %v1003
    %v1005 = vpack.c.bf16 %v1004, %v1004
    %v1007 = vsel %vm331, %v1005, 0
    %1009 = vmatpush.bf16.msra.mxu0 0
    %1010 = vmatpush.bf16.msra.mxu0 0
    %1011 = vmatpush.bf16.msra.mxu0 0
    %1012 = vmatpush.bf16.msra.mxu0 0
    %1013 = vmatpush.bf16.msra.mxu0 %v311
    %1014 = vmatpush.bf16.msra.mxu0 %v307
    %1015 = vmatpush.bf16.msra.mxu0 %v303
    %1016 = vmatpush.bf16.msra.mxu0 %v299
    %1017 = vmatmul.bf16.gmra.mxu0 %v1007
    %v1018 = vpop.f32.mrf.mxu0
    %v1019 = vadd.f32 0.0, %v1018
    %v1020 = vpop.f32.mrf.mxu0
    %1021 = vdwg.mxu0
    %1022 = vmatpush.bf16.msra.mxu0 0
    %1023 = vmatpush.bf16.msra.mxu0 0
    %1024 = vmatpush.bf16.msra.mxu0 0
    %1025 = vmatpush.bf16.msra.mxu0 0
    %1026 = vmatpush.bf16.msra.mxu0 %v312
    %1027 = vmatpush.bf16.msra.mxu0 %v308
    %1028 = vmatpush.bf16.msra.mxu0 %v304
    %1029 = vmatpush.bf16.msra.mxu0 %v300
    %1030 = vmatmul.bf16.gmra.mxu0 %v1007
    %v1031 = vpop.f32.mrf.mxu0
    %v1032 = vadd.f32 0.0, %v1031
    %v1033 = vpop.f32.mrf.mxu0
    %1034 = vdwg.mxu0
    %1035 = vmatpush.bf16.msra.mxu0 0
    %1036 = vmatpush.bf16.msra.mxu0 0
    %1037 = vmatpush.bf16.msra.mxu0 0
    %1038 = vmatpush.bf16.msra.mxu0 0
    %1039 = vmatpush.bf16.msra.mxu0 %v313
    %1040 = vmatpush.bf16.msra.mxu0 %v309
    %1041 = vmatpush.bf16.msra.mxu0 %v305
    %1042 = vmatpush.bf16.msra.mxu0 %v301
    %1043 = vmatmul.bf16.gmra.mxu0 %v1007
    %v1044 = vpop.f32.mrf.mxu0
    %v1045 = vadd.f32 0.0, %v1044
    %v1046 = vpop.f32.mrf.mxu0
    %1047 = vdwg.mxu0
    %1048 = vmatpush.bf16.msra.mxu0 0
    %1049 = vmatpush.bf16.msra.mxu0 0
    %1050 = vmatpush.bf16.msra.mxu0 0
    %1051 = vmatpush.bf16.msra.mxu0 0
    %1052 = vmatpush.bf16.msra.mxu0 %v314
    %1053 = vmatpush.bf16.msra.mxu0 %v310
    %1054 = vmatpush.bf16.msra.mxu0 %v306
    %1055 = vmatpush.bf16.msra.mxu0 %v302
    %1056 = vmatmul.bf16.gmra.mxu0 %v1007
    %v1057 = vpop.f32.mrf.mxu0
    %v1058 = vadd.f32 0.0, %v1057
    %v1059 = vpop.f32.mrf.mxu0
    %1060 = vdwg.mxu0
    %v1065 = vrot.slane %v1019, 6
    %v1066 = vrot.slane %v1032, 6
    %v1067 = vrot.slane %v1045, 6
    %v1068 = vrot.slane %v1058, 6
    %v1073 = vadd.f32 %v171, %v1065
    %v1074 = vadd.f32 %v185, %v1066
    %v1075 = vadd.f32 %v199, %v1067
    %v1076 = vadd.f32 %v213, %v1068
    %v1077 = vxor.u32 %v1073, 2147483648
    %v1078 = vmul.f32 %v1077, 1.442695
    %v1079 = vpow.pop %v1078
    %v1080 = vadd.f32 %v1079, 1.0
    %v1081 = vrcp.pop %v1080
    %v1082 = vmul.f32 %v1080, %v1081
    %v1083 = vsub.f32 1.0, %v1082
    %v1084 = vmul.f32 %v1081, %v1083
    %v1085 = vadd.f32 %v1081, %v1084
    %vm1086 = vweird.f32 %v1080
    %vm1087 = vweird.f32 %v1081
    %vm1088 = vmor %vm1086, %vm1087
    %v1089 = vsel %vm1088, %v1081, %v1085
    %v1090 = vand.u32 2147483647, %v1080
    %vm1091 = vcmp.eq.f32.partialorder %v1090, 8.507059e+37
    %v1092 = vand.u32 %v1080, 2147483648
    %v1093 = vor.u32 1.1754944e-38, %v1092
    %v1094 = vsel %vm1091, %v1093, %v1089
    %v1095 = vmul.f32 1.0, %v1094
    %v1096 = vxor.u32 %v1074, 2147483648
    %v1097 = vmul.f32 %v1096, 1.442695
    %v1098 = vpow.pop %v1097
    %v1099 = vadd.f32 %v1098, 1.0
    %v1100 = vrcp.pop %v1099
    %v1101 = vmul.f32 %v1099, %v1100
    %v1102 = vsub.f32 1.0, %v1101
    %v1103 = vmul.f32 %v1100, %v1102
    %v1104 = vadd.f32 %v1100, %v1103
    %vm1105 = vweird.f32 %v1099
    %vm1106 = vweird.f32 %v1100
    %vm1107 = vmor %vm1105, %vm1106
    %v1108 = vsel %vm1107, %v1100, %v1104
    %v1109 = vand.u32 2147483647, %v1099
    %vm1110 = vcmp.eq.f32.partialorder %v1109, 8.507059e+37
    %v1111 = vand.u32 %v1099, 2147483648
    %v1112 = vor.u32 1.1754944e-38, %v1111
    %v1113 = vsel %vm1110, %v1112, %v1108
    %v1114 = vmul.f32 1.0, %v1113
    %v1115 = vtanh.pop %v1075
    %v1116 = vxor.u32 %v1076, 2147483648
    %v1117 = vmul.f32 %v1116, 1.442695
    %v1118 = vpow.pop %v1117
    %v1119 = vadd.f32 %v1118, 1.0
    %v1120 = vrcp.pop %v1119
    %v1121 = vmul.f32 %v1119, %v1120
    %v1122 = vsub.f32 1.0, %v1121
    %v1123 = vmul.f32 %v1120, %v1122
    %v1124 = vadd.f32 %v1120, %v1123
    %vm1125 = vweird.f32 %v1119
    %vm1126 = vweird.f32 %v1120
    %vm1127 = vmor %vm1125, %vm1126
    %v1128 = vsel %vm1127, %v1120, %v1124
    %v1129 = vand.u32 2147483647, %v1119
    %vm1130 = vcmp.eq.f32.partialorder %v1129, 8.507059e+37
    %v1131 = vand.u32 %v1119, 2147483648
    %v1132 = vor.u32 1.1754944e-38, %v1131
    %v1133 = vsel %vm1130, %v1132, %v1128
    %v1134 = vmul.f32 1.0, %v1133
    %v1136 = vrot.slane %v1002, 6
    %v1138 = vmul.f32 %v1114, %v1136
    %v1139 = vmul.f32 %v1095, %v1115
    %v1140 = vadd.f32 %v1138, %v1139
    %v1141 = vtanh.pop %v1140
    %v1142 = vmul.f32 %v1134, %v1141
    %v1143 = vpack.c.bf16 %v1142, %v1142
    %v1145 = vrot.slane %v1143, 1
    %v1147 = vsel %vm331, %v1145, 0
    %1149 = vmatpush.bf16.msra.mxu0 0
    %1150 = vmatpush.bf16.msra.mxu0 0
    %1151 = vmatpush.bf16.msra.mxu0 0
    %1152 = vmatpush.bf16.msra.mxu0 0
    %1153 = vmatpush.bf16.msra.mxu0 %v311
    %1154 = vmatpush.bf16.msra.mxu0 %v307
    %1155 = vmatpush.bf16.msra.mxu0 %v303
    %1156 = vmatpush.bf16.msra.mxu0 %v299
    %1157 = vmatmul.bf16.gmra.mxu0 %v1147
    %v1158 = vpop.f32.mrf.mxu0
    %v1159 = vadd.f32 0.0, %v1158
    %v1160 = vpop.f32.mrf.mxu0
    %1161 = vdwg.mxu0
    %1162 = vmatpush.bf16.msra.mxu0 0
    %1163 = vmatpush.bf16.msra.mxu0 0
    %1164 = vmatpush.bf16.msra.mxu0 0
    %1165 = vmatpush.bf16.msra.mxu0 0
    %1166 = vmatpush.bf16.msra.mxu0 %v312
    %1167 = vmatpush.bf16.msra.mxu0 %v308
    %1168 = vmatpush.bf16.msra.mxu0 %v304
    %1169 = vmatpush.bf16.msra.mxu0 %v300
    %1170 = vmatmul.bf16.gmra.mxu0 %v1147
    %v1171 = vpop.f32.mrf.mxu0
    %v1172 = vadd.f32 0.0, %v1171
    %v1173 = vpop.f32.mrf.mxu0
    %1174 = vdwg.mxu0
    %1175 = vmatpush.bf16.msra.mxu0 0
    %1176 = vmatpush.bf16.msra.mxu0 0
    %1177 = vmatpush.bf16.msra.mxu0 0
    %1178 = vmatpush.bf16.msra.mxu0 0
    %1179 = vmatpush.bf16.msra.mxu0 %v313
    %1180 = vmatpush.bf16.msra.mxu0 %v309
    %1181 = vmatpush.bf16.msra.mxu0 %v305
    %1182 = vmatpush.bf16.msra.mxu0 %v301
    %1183 = vmatmul.bf16.gmra.mxu0 %v1147
    %v1184 = vpop.f32.mrf.mxu0
    %v1185 = vadd.f32 0.0, %v1184
    %v1186 = vpop.f32.mrf.mxu0
    %1187 = vdwg.mxu0
    %1188 = vmatpush.bf16.msra.mxu0 0
    %1189 = vmatpush.bf16.msra.mxu0 0
    %1190 = vmatpush.bf16.msra.mxu0 0
    %1191 = vmatpush.bf16.msra.mxu0 0
    %1192 = vmatpush.bf16.msra.mxu0 %v314
    %1193 = vmatpush.bf16.msra.mxu0 %v310
    %1194 = vmatpush.bf16.msra.mxu0 %v306
    %1195 = vmatpush.bf16.msra.mxu0 %v302
    %1196 = vmatmul.bf16.gmra.mxu0 %v1147
    %v1197 = vpop.f32.mrf.mxu0
    %v1198 = vadd.f32 0.0, %v1197
    %v1199 = vpop.f32.mrf.mxu0
    %1200 = vdwg.mxu0
    %v1205 = vrot.slane %v1159, 4
    %v1206 = vrot.slane %v1172, 4
    %v1207 = vrot.slane %v1185, 4
    %v1208 = vrot.slane %v1198, 4
    %v1213 = vadd.f32 %v171, %v1205
    %v1214 = vadd.f32 %v185, %v1206
    %v1215 = vadd.f32 %v199, %v1207
    %v1216 = vadd.f32 %v213, %v1208
    %v1217 = vxor.u32 %v1213, 2147483648
    %v1218 = vmul.f32 %v1217, 1.442695
    %v1219 = vpow.pop %v1218
    %v1220 = vadd.f32 %v1219, 1.0
    %v1221 = vrcp.pop %v1220
    %v1222 = vmul.f32 %v1220, %v1221
    %v1223 = vsub.f32 1.0, %v1222
    %v1224 = vmul.f32 %v1221, %v1223
    %v1225 = vadd.f32 %v1221, %v1224
    %vm1226 = vweird.f32 %v1220
    %vm1227 = vweird.f32 %v1221
    %vm1228 = vmor %vm1226, %vm1227
    %v1229 = vsel %vm1228, %v1221, %v1225
    %v1230 = vand.u32 2147483647, %v1220
    %vm1231 = vcmp.eq.f32.partialorder %v1230, 8.507059e+37
    %v1232 = vand.u32 %v1220, 2147483648
    %v1233 = vor.u32 1.1754944e-38, %v1232
    %v1234 = vsel %vm1231, %v1233, %v1229
    %v1235 = vmul.f32 1.0, %v1234
    %v1236 = vxor.u32 %v1214, 2147483648
    %v1237 = vmul.f32 %v1236, 1.442695
    %v1238 = vpow.pop %v1237
    %v1239 = vadd.f32 %v1238, 1.0
    %v1240 = vrcp.pop %v1239
    %v1241 = vmul.f32 %v1239, %v1240
    %v1242 = vsub.f32 1.0, %v1241
    %v1243 = vmul.f32 %v1240, %v1242
    %v1244 = vadd.f32 %v1240, %v1243
    %vm1245 = vweird.f32 %v1239
    %vm1246 = vweird.f32 %v1240
    %vm1247 = vmor %vm1245, %vm1246
    %v1248 = vsel %vm1247, %v1240, %v1244
    %v1249 = vand.u32 2147483647, %v1239
    %vm1250 = vcmp.eq.f32.partialorder %v1249, 8.507059e+37
    %v1251 = vand.u32 %v1239, 2147483648
    %v1252 = vor.u32 1.1754944e-38, %v1251
    %v1253 = vsel %vm1250, %v1252, %v1248
    %v1254 = vmul.f32 1.0, %v1253
    %v1255 = vtanh.pop %v1215
    %v1256 = vxor.u32 %v1216, 2147483648
    %v1257 = vmul.f32 %v1256, 1.442695
    %v1258 = vpow.pop %v1257
    %v1259 = vadd.f32 %v1258, 1.0
    %v1260 = vrcp.pop %v1259
    %v1261 = vmul.f32 %v1259, %v1260
    %v1262 = vsub.f32 1.0, %v1261
    %v1263 = vmul.f32 %v1260, %v1262
    %v1264 = vadd.f32 %v1260, %v1263
    %vm1265 = vweird.f32 %v1259
    %vm1266 = vweird.f32 %v1260
    %vm1267 = vmor %vm1265, %vm1266
    %v1268 = vsel %vm1267, %v1260, %v1264
    %v1269 = vand.u32 2147483647, %v1259
    %vm1270 = vcmp.eq.f32.partialorder %v1269, 8.507059e+37
    %v1271 = vand.u32 %v1259, 2147483648
    %v1272 = vor.u32 1.1754944e-38, %v1271
    %v1273 = vsel %vm1270, %v1272, %v1268
    %v1274 = vmul.f32 1.0, %v1273
    %v1276 = vrot.slane %v1140, 6
    %v1278 = vmul.f32 %v1254, %v1276
    %v1279 = vmul.f32 %v1235, %v1255
    %v1280 = vadd.f32 %v1278, %v1279
    %v1281 = vtanh.pop %v1280
    %v1282 = vmul.f32 %v1274, %v1281
    %v1283 = vpack.c.bf16 %v1282, %v1282
    %v1285 = vrot.slane %v1283, 2
    %v1287 = vsel %vm331, %v1285, 0
    %1289 = vmatpush.bf16.msra.mxu0 0
    %1290 = vmatpush.bf16.msra.mxu0 0
    %1291 = vmatpush.bf16.msra.mxu0 0
    %1292 = vmatpush.bf16.msra.mxu0 0
    %1293 = vmatpush.bf16.msra.mxu0 %v311
    %1294 = vmatpush.bf16.msra.mxu0 %v307
    %1295 = vmatpush.bf16.msra.mxu0 %v303
    %1296 = vmatpush.bf16.msra.mxu0 %v299
    %1297 = vmatmul.bf16.gmra.mxu0 %v1287
    %v1298 = vpop.f32.mrf.mxu0
    %v1299 = vadd.f32 0.0, %v1298
    %v1300 = vpop.f32.mrf.mxu0
    %1301 = vdwg.mxu0
    %1302 = vmatpush.bf16.msra.mxu0 0
    %1303 = vmatpush.bf16.msra.mxu0 0
    %1304 = vmatpush.bf16.msra.mxu0 0
    %1305 = vmatpush.bf16.msra.mxu0 0
    %1306 = vmatpush.bf16.msra.mxu0 %v312
    %1307 = vmatpush.bf16.msra.mxu0 %v308
    %1308 = vmatpush.bf16.msra.mxu0 %v304
    %1309 = vmatpush.bf16.msra.mxu0 %v300
    %1310 = vmatmul.bf16.gmra.mxu0 %v1287
    %v1311 = vpop.f32.mrf.mxu0
    %v1312 = vadd.f32 0.0, %v1311
    %v1313 = vpop.f32.mrf.mxu0
    %1314 = vdwg.mxu0
    %1315 = vmatpush.bf16.msra.mxu0 0
    %1316 = vmatpush.bf16.msra.mxu0 0
    %1317 = vmatpush.bf16.msra.mxu0 0
    %1318 = vmatpush.bf16.msra.mxu0 0
    %1319 = vmatpush.bf16.msra.mxu0 %v313
    %1320 = vmatpush.bf16.msra.mxu0 %v309
    %1321 = vmatpush.bf16.msra.mxu0 %v305
    %1322 = vmatpush.bf16.msra.mxu0 %v301
    %1323 = vmatmul.bf16.gmra.mxu0 %v1287
    %v1324 = vpop.f32.mrf.mxu0
    %v1325 = vadd.f32 0.0, %v1324
    %v1326 = vpop.f32.mrf.mxu0
    %1327 = vdwg.mxu0
    %1328 = vmatpush.bf16.msra.mxu0 0
    %1329 = vmatpush.bf16.msra.mxu0 0
    %1330 = vmatpush.bf16.msra.mxu0 0
    %1331 = vmatpush.bf16.msra.mxu0 0
    %1332 = vmatpush.bf16.msra.mxu0 %v314
    %1333 = vmatpush.bf16.msra.mxu0 %v310
    %1334 = vmatpush.bf16.msra.mxu0 %v306
    %1335 = vmatpush.bf16.msra.mxu0 %v302
    %1336 = vmatmul.bf16.gmra.mxu0 %v1287
    %v1337 = vpop.f32.mrf.mxu0
    %v1338 = vadd.f32 0.0, %v1337
    %v1339 = vpop.f32.mrf.mxu0
    %1340 = vdwg.mxu0
    %v1345 = vrot.slane %v1299, 2
    %v1346 = vrot.slane %v1312, 2
    %v1347 = vrot.slane %v1325, 2
    %v1348 = vrot.slane %v1338, 2
    %v1353 = vadd.f32 %v171, %v1345
    %v1354 = vadd.f32 %v185, %v1346
    %v1355 = vadd.f32 %v199, %v1347
    %v1356 = vadd.f32 %v213, %v1348
    %v1357 = vxor.u32 %v1353, 2147483648
    %v1358 = vmul.f32 %v1357, 1.442695
    %v1359 = vpow.pop %v1358
    %v1360 = vadd.f32 %v1359, 1.0
    %v1361 = vrcp.pop %v1360
    %v1362 = vmul.f32 %v1360, %v1361
    %v1363 = vsub.f32 1.0, %v1362
    %v1364 = vmul.f32 %v1361, %v1363
    %v1365 = vadd.f32 %v1361, %v1364
    %vm1366 = vweird.f32 %v1360
    %vm1367 = vweird.f32 %v1361
    %vm1368 = vmor %vm1366, %vm1367
    %v1369 = vsel %vm1368, %v1361, %v1365
    %v1370 = vand.u32 2147483647, %v1360
    %vm1371 = vcmp.eq.f32.partialorder %v1370, 8.507059e+37
    %v1372 = vand.u32 %v1360, 2147483648
    %v1373 = vor.u32 1.1754944e-38, %v1372
    %v1374 = vsel %vm1371, %v1373, %v1369
    %v1375 = vmul.f32 1.0, %v1374
    %v1376 = vxor.u32 %v1354, 2147483648
    %v1377 = vmul.f32 %v1376, 1.442695
    %v1378 = vpow.pop %v1377
    %v1379 = vadd.f32 %v1378, 1.0
    %v1380 = vrcp.pop %v1379
    %v1381 = vmul.f32 %v1379, %v1380
    %v1382 = vsub.f32 1.0, %v1381
    %v1383 = vmul.f32 %v1380, %v1382
    %v1384 = vadd.f32 %v1380, %v1383
    %vm1385 = vweird.f32 %v1379
    %vm1386 = vweird.f32 %v1380
    %vm1387 = vmor %vm1385, %vm1386
    %v1388 = vsel %vm1387, %v1380, %v1384
    %v1389 = vand.u32 2147483647, %v1379
    %vm1390 = vcmp.eq.f32.partialorder %v1389, 8.507059e+37
    %v1391 = vand.u32 %v1379, 2147483648
    %v1392 = vor.u32 1.1754944e-38, %v1391
    %v1393 = vsel %vm1390, %v1392, %v1388
    %v1394 = vmul.f32 1.0, %v1393
    %v1395 = vtanh.pop %v1355
    %v1396 = vxor.u32 %v1356, 2147483648
    %v1397 = vmul.f32 %v1396, 1.442695
    %v1398 = vpow.pop %v1397
    %v1399 = vadd.f32 %v1398, 1.0
    %v1400 = vrcp.pop %v1399
    %v1401 = vmul.f32 %v1399, %v1400
    %v1402 = vsub.f32 1.0, %v1401
    %v1403 = vmul.f32 %v1400, %v1402
    %v1404 = vadd.f32 %v1400, %v1403
    %vm1405 = vweird.f32 %v1399
    %vm1406 = vweird.f32 %v1400
    %vm1407 = vmor %vm1405, %vm1406
    %v1408 = vsel %vm1407, %v1400, %v1404
    %v1409 = vand.u32 2147483647, %v1399
    %vm1410 = vcmp.eq.f32.partialorder %v1409, 8.507059e+37
    %v1411 = vand.u32 %v1399, 2147483648
    %v1412 = vor.u32 1.1754944e-38, %v1411
    %v1413 = vsel %vm1410, %v1412, %v1408
    %v1414 = vmul.f32 1.0, %v1413
    %v1416 = vrot.slane %v1280, 6
    %v1418 = vmul.f32 %v1394, %v1416
    %v1419 = vmul.f32 %v1375, %v1395
    %v1420 = vadd.f32 %v1418, %v1419
    %v1421 = vtanh.pop %v1420
    %v1422 = vmul.f32 %v1414, %v1421
    %v1423 = vpack.c.bf16 %v1422, %v1422
    %v1425 = vrot.slane %v1423, 3
    %v1427 = vsel %vm331, %v1425, 0
    %1429 = vmatpush.bf16.msra.mxu0 0
    %1430 = vmatpush.bf16.msra.mxu0 0
    %1431 = vmatpush.bf16.msra.mxu0 0
    %1432 = vmatpush.bf16.msra.mxu0 0
    %1433 = vmatpush.bf16.msra.mxu0 %v311
    %1434 = vmatpush.bf16.msra.mxu0 %v307
    %1435 = vmatpush.bf16.msra.mxu0 %v303
    %1436 = vmatpush.bf16.msra.mxu0 %v299
    %1437 = vmatmul.bf16.gmra.mxu0 %v1427
    %v1438 = vpop.f32.mrf.mxu0
    %v1439 = vadd.f32 0.0, %v1438
    %v1440 = vpop.f32.mrf.mxu0
    %1441 = vdwg.mxu0
    %1442 = vmatpush.bf16.msra.mxu0 0
    %1443 = vmatpush.bf16.msra.mxu0 0
    %1444 = vmatpush.bf16.msra.mxu0 0
    %1445 = vmatpush.bf16.msra.mxu0 0
    %1446 = vmatpush.bf16.msra.mxu0 %v312
    %1447 = vmatpush.bf16.msra.mxu0 %v308
    %1448 = vmatpush.bf16.msra.mxu0 %v304
    %1449 = vmatpush.bf16.msra.mxu0 %v300
    %1450 = vmatmul.bf16.gmra.mxu0 %v1427
    %v1451 = vpop.f32.mrf.mxu0
    %v1452 = vadd.f32 0.0, %v1451
    %v1453 = vpop.f32.mrf.mxu0
    %1454 = vdwg.mxu0
    %1455 = vmatpush.bf16.msra.mxu0 0
    %1456 = vmatpush.bf16.msra.mxu0 0
    %1457 = vmatpush.bf16.msra.mxu0 0
    %1458 = vmatpush.bf16.msra.mxu0 0
    %1459 = vmatpush.bf16.msra.mxu0 %v313
    %1460 = vmatpush.bf16.msra.mxu0 %v309
    %1461 = vmatpush.bf16.msra.mxu0 %v305
    %1462 = vmatpush.bf16.msra.mxu0 %v301
    %1463 = vmatmul.bf16.gmra.mxu0 %v1427
    %v1464 = vpop.f32.mrf.mxu0
    %v1465 = vadd.f32 0.0, %v1464
    %v1466 = vpop.f32.mrf.mxu0
    %1467 = vdwg.mxu0
    %1468 = vmatpush.bf16.msra.mxu0 0
    %1469 = vmatpush.bf16.msra.mxu0 0
    %1470 = vmatpush.bf16.msra.mxu0 0
    %1471 = vmatpush.bf16.msra.mxu0 0
    %1472 = vmatpush.bf16.msra.mxu0 %v314
    %1473 = vmatpush.bf16.msra.mxu0 %v310
    %1474 = vmatpush.bf16.msra.mxu0 %v306
    %1475 = vmatpush.bf16.msra.mxu0 %v302
    %1476 = vmatmul.bf16.gmra.mxu0 %v1427
    %v1477 = vpop.f32.mrf.mxu0
    %v1478 = vadd.f32 0.0, %v1477
    %v1479 = vpop.f32.mrf.mxu0
    %1480 = vdwg.mxu0
    %v1485 = vrot.slane %v1439, 2
    %v1486 = vrot.slane %v1452, 2
    %v1487 = vrot.slane %v1465, 2
    %v1488 = vrot.slane %v1478, 2
    %v1493 = vadd.f32 %v171, %v1485
    %v1494 = vadd.f32 %v185, %v1486
    %v1495 = vadd.f32 %v199, %v1487
    %v1496 = vadd.f32 %v213, %v1488
    %v1497 = vxor.u32 %v1493, 2147483648
    %v1498 = vmul.f32 %v1497, 1.442695
    %v1499 = vpow.pop %v1498
    %v1500 = vadd.f32 %v1499, 1.0
    %v1501 = vrcp.pop %v1500
    %v1502 = vmul.f32 %v1500, %v1501
    %v1503 = vsub.f32 1.0, %v1502
    %v1504 = vmul.f32 %v1501, %v1503
    %v1505 = vadd.f32 %v1501, %v1504
    %vm1506 = vweird.f32 %v1500
    %vm1507 = vweird.f32 %v1501
    %vm1508 = vmor %vm1506, %vm1507
    %v1509 = vsel %vm1508, %v1501, %v1505
    %v1510 = vand.u32 2147483647, %v1500
    %vm1511 = vcmp.eq.f32.partialorder %v1510, 8.507059e+37
    %v1512 = vand.u32 %v1500, 2147483648
    %v1513 = vor.u32 1.1754944e-38, %v1512
    %v1514 = vsel %vm1511, %v1513, %v1509
    %v1515 = vmul.f32 1.0, %v1514
    %v1516 = vxor.u32 %v1494, 2147483648
    %v1517 = vmul.f32 %v1516, 1.442695
    %v1518 = vpow.pop %v1517
    %v1519 = vadd.f32 %v1518, 1.0
    %v1520 = vrcp.pop %v1519
    %v1521 = vmul.f32 %v1519, %v1520
    %v1522 = vsub.f32 1.0, %v1521
    %v1523 = vmul.f32 %v1520, %v1522
    %v1524 = vadd.f32 %v1520, %v1523
    %vm1525 = vweird.f32 %v1519
    %vm1526 = vweird.f32 %v1520
    %vm1527 = vmor %vm1525, %vm1526
    %v1528 = vsel %vm1527, %v1520, %v1524
    %v1529 = vand.u32 2147483647, %v1519
    %vm1530 = vcmp.eq.f32.partialorder %v1529, 8.507059e+37
    %v1531 = vand.u32 %v1519, 2147483648
    %v1532 = vor.u32 1.1754944e-38, %v1531
    %v1533 = vsel %vm1530, %v1532, %v1528
    %v1534 = vmul.f32 1.0, %v1533
    %v1535 = vtanh.pop %v1495
    %v1536 = vxor.u32 %v1496, 2147483648
    %v1537 = vmul.f32 %v1536, 1.442695
    %v1538 = vpow.pop %v1537
    %v1539 = vadd.f32 %v1538, 1.0
    %v1540 = vrcp.pop %v1539
    %v1541 = vmul.f32 %v1539, %v1540
    %v1542 = vsub.f32 1.0, %v1541
    %v1543 = vmul.f32 %v1540, %v1542
    %v1544 = vadd.f32 %v1540, %v1543
    %vm1545 = vweird.f32 %v1539
    %vm1546 = vweird.f32 %v1540
    %vm1547 = vmor %vm1545, %vm1546
    %v1548 = vsel %vm1547, %v1540, %v1544
    %v1549 = vand.u32 2147483647, %v1539
    %vm1550 = vcmp.eq.f32.partialorder %v1549, 8.507059e+37
    %v1551 = vand.u32 %v1539, 2147483648
    %v1552 = vor.u32 1.1754944e-38, %v1551
    %v1553 = vsel %vm1550, %v1552, %v1548
    %v1554 = vmul.f32 1.0, %v1553
    %v1555 = vmul.f32 %v1534, %v1420
    %v1556 = vmul.f32 %v1515, %v1535
    %v1557 = vadd.f32 %v1555, %v1556
    %v1558 = vtanh.pop %v1557
    %v1559 = vmul.f32 %v1554, %v1558
    %vm1560 = vcmp.ge.s32.totalorder %v233, 32
    %vm1561 = vcmp.lt.s32.totalorder %v233, 64
    %vm1562 = vmand %vm1560, %vm1561
    %v1563 = vsel %vm1562, %v1557, %v1420
    %v1564 = vsel %vm1562, %v1559, %v1422
    %vm1565 = vcmask 261126
    %1566 = vst.msk [vmem:[#allocation9 - $0x6] sm:$0xc0] %vm1565, %v1564
    %1567 = vst.msk [vmem:[#allocation11 - $0x6] sm:$0xc0] %vm1565, %v1563
    %1569 = vrot.lane.b32.xlu0 %v1564, 96
    %v1570 = vpop.permute.xlu0 %1569
    %s1572 = scalar_lea.vmem [#allocation9], 2
    %1573 = vst.msk [vmem:[%s1572 - $0x6] sm:$0xc0] %vm1565, %v1570
    %1575 = vrot.lane.b32.xlu0 %v1563, 96
    %v1576 = vpop.permute.xlu0 %1575
    %s1578 = scalar_lea.vmem [#allocation11], 2
    %1579 = vst.msk [vmem:[%s1578 - $0x6] sm:$0xc0] %vm1565, %v1576
    %v1580 = vpack.c.bf16 %v1564, %v1564
    %v1581 = vld [vmem:[%s5] sm:$0xf]
    %v1582 = vld [vmem:[%s5 + $0x4] sm:$0xf]
    %v1583 = vld [vmem:[%s5 + $0x8] sm:$0xf]
    %v1584 = vld [vmem:[%s5 + $0xc] sm:$0xf]
    %v1585 = vld [vmem:[%s6] sm:$0x1]
    %v1587 = vperm.slane %v1585, 0
    %v1590 = vrot.slane %v1580, 3
    %1591 = vrot.lane.b32.xlu0 %v1590, 96
    %v1592 = vpop.permute.xlu0 %1591
    %v1597 = vunpack.c.l.b16 %v1581
    %v1598 = vunpack.c.l.b16 %v1582
    %v1599 = vunpack.c.l.b16 %v1583
    %v1600 = vunpack.c.l.b16 %v1584
    %v1601 = vpack.c.b16 %v1598, %v1597
    %v1602 = vpack.c.b16 %v1600, %v1599
    %v1606 = vsel %vm222, %v1592, 0
    %1608 = vmatpush.bf16.msra.mxu0 0
    %1609 = vmatpush.bf16.msra.mxu0 0
    %1610 = vmatpush.bf16.msra.mxu0 0
    %1611 = vmatpush.bf16.msra.mxu0 0
    %1612 = vmatpush.bf16.msra.mxu0 0
    %1613 = vmatpush.bf16.msra.mxu0 0
    %1614 = vmatpush.bf16.msra.mxu0 %v1602
    %1615 = vmatpush.bf16.msra.mxu0 %v1601
    %1616 = vmatmul.bf16.gmra.mxu0 %v1606
    %v1617 = vpop.f32.mrf.mxu0
    %v1618 = vadd.f32 %v1587, %v1617
    %v1619 = vpop.f32.mrf.mxu0
    %1620 = vdwg.mxu0
    %vm1621 = vcmask 9216
    %1622 = vst.msk [vmem:[#allocation8] sm:$0x3] %vm1621, %v1618
    // Predicated region
    $region54: #{lstm_predictor_forward.1} parent=1 // pred_check
      _
    $region55: #{lstm_predictor_forward.1} parent=1 // pred_check_branch
      %1624 = sbr.rel (0) target = $region57
    $region56: #{lstm_predictor_forward.1} parent=1 // pred_region
      %1626 = vsyncadd [#allocation4], 0
      %s1628 = sshll.u32 [#allocation8], 4
      %s1629 = int_to_ptr.vmem [resolvable:$true] %s1628
      %s1630 = sshll.u32 %s10, 4
      %s1631 = int_to_ptr.hbm [resolvable:$true] %s1630
      %1633 = dma.vmem_to_hbm [thread:$0]  %s1629, 32, %s1631, [#allocation4]
    $region57: #{lstm_predictor_forward.1} parent=1 // pred_fallthru
      _
    // Predicated region
    $region58: #{lstm_predictor_forward.1} parent=1 // pred_check
      _
    $region59: #{lstm_predictor_forward.1} parent=1 // pred_check_branch
      %1635 = sbr.rel (0) target = $region61
    $region60: #{lstm_predictor_forward.1} parent=1 // pred_region
      %1637 = vsyncadd [#allocation10], 0
      %s1638 = sshll.u32 [#allocation9], 4
      %s1639 = int_to_ptr.vmem [resolvable:$true] %s1638
      %s1640 = sshll.u32 %s11, 4
      %s1641 = int_to_ptr.hbm [resolvable:$true] %s1640
      %1646 = dma.vmem_to_hbm [thread:$0]  %s1639, 64, %s1641, [#allocation10], 32, 32, 2
    $region61: #{lstm_predictor_forward.1} parent=1 // pred_fallthru
      _
    // Predicated region
    $region62: #{lstm_predictor_forward.1} parent=1 // pred_check
      _
    $region63: #{lstm_predictor_forward.1} parent=1 // pred_check_branch
      %1648 = sbr.rel (0) target = $region65
    $region64: #{lstm_predictor_forward.1} parent=1 // pred_region
      %1650 = vsyncadd [#allocation10], 0
      %s1651 = sshll.u32 [#allocation11], 4
      %s1652 = int_to_ptr.vmem [resolvable:$true] %s1651
      %s1653 = sshll.u32 %s12, 4
      %s1654 = int_to_ptr.hbm [resolvable:$true] %s1653
      %1659 = dma.vmem_to_hbm [thread:$0]  %s1652, 64, %s1654, [#allocation10], 32, 32, 2
    $region65: #{lstm_predictor_forward.1} parent=1 // pred_fallthru
      _
    // Predicated region
    $region66: #{lstm_predictor_forward.1} parent=1 // pred_check
      _
    $region67: #{lstm_predictor_forward.1} parent=1 // pred_check_branch
      %1661 = sbr.rel (0) target = $region69
    $region68: #{lstm_predictor_forward.1} parent=1 // pred_region
      %1663 = dma.done [#allocation4], 32
    $region69: #{lstm_predictor_forward.1} parent=1 // pred_fallthru
      _
    // Predicated region
    $region70: #{lstm_predictor_forward.1} parent=1 // pred_check
      _
    $region71: #{lstm_predictor_forward.1} parent=1 // pred_check_branch
      %1665 = sbr.rel (0) target = $region73
    $region72: #{lstm_predictor_forward.1} parent=1 // pred_region
      %1667 = dma.done [#allocation10], 64
    $region73: #{lstm_predictor_forward.1} parent=1 // pred_fallthru
      _
    // Predicated region
    $region74: #{lstm_predictor_forward.1} parent=1 // pred_check
      _
    $region75: #{lstm_predictor_forward.1} parent=1 // pred_check_branch
      %1669 = sbr.rel (0) target = $region77
    $region76: #{lstm_predictor_forward.1} parent=1 // pred_region
      %1671 = dma.done [#allocation10], 64
    $region77: #{lstm_predictor_forward.1} parent=1 // pred_fallthru
      _
    %1672 = vsyncpa [#allocation3], 1
    %1673 = vsyncpa [#allocation6], 1
    %1674 = vsyncpa [#allocation4], 1
    %1675 = vsyncpa [#allocation10], 1

</llo_original>
